<compile_context>
chip_gen: v7x
topology: tpu7x:2x2x1
jax: 0.10.0
libtpu: 0.0.40
codegen_flags: <defaults>
</compile_context>

<pallas_src>
import functools

import jax
import jax.numpy as jnp
from jax.experimental import pallas as pl
from jax.experimental.pallas import tpu as pltpu


def _round_up(x, m):
    return ((x + m - 1) // m) * m


# ---------------------------------------------------------------------------
# Fused decoder kernel: one batch-row tile per grid step, weights replicated
# (constant index_map -> never re-DMA'd), intermediates live in vregs/VMEM.
# ---------------------------------------------------------------------------
def _decoder_kernel(x_ref, w1_ref, b1_ref, w2_ref, b2_ref, w3_ref, b3_ref,
                    o_ref):
    cdt = w1_ref.dtype
    # x arrives as f32; cast to the MXU operand dtype in-kernel (VPU slot).
    x = x_ref[...].astype(cdt)

    # Layer 1: LeakyReLU_0.2(x @ W1 + b1)  -- f32 MXU accumulation
    h = jnp.dot(x, w1_ref[...], preferred_element_type=jnp.float32)
    h = h + b1_ref[...]
    h = jnp.where(h > 0.0, h, 0.2 * h)

    # Layer 2: LeakyReLU_0.2(h @ W2 + b2)
    h = jnp.dot(h.astype(cdt), w2_ref[...], preferred_element_type=jnp.float32)
    h = h + b2_ref[...]
    h = jnp.where(h > 0.0, h, 0.2 * h)

    # Output layer: sigmoid(h @ W3 + b3)  (exp goes to the EUP slot)
    y = jnp.dot(h.astype(cdt), w3_ref[...], preferred_element_type=jnp.float32)
    y = y + b3_ref[...]
    o_ref[...] = jax.nn.sigmoid(y).astype(o_ref.dtype)


# ---------------------------------------------------------------------------
# One-time parameter preprocessing (hoisted out of the forward path):
# PyTorch (out,in) -> (in,out), zero-pad to lane-dense dims, pre-cast to bf16.
# ---------------------------------------------------------------------------
def prepare_params(params, compute_dtype=jnp.bfloat16):
    w1 = jnp.asarray(params["w1"], jnp.float32).T   # (latent, hidden)
    w2 = jnp.asarray(params["w2"], jnp.float32).T   # (hidden, hidden)
    w3 = jnp.asarray(params["w3"], jnp.float32).T   # (hidden, output)
    b1 = jnp.asarray(params["b1"], jnp.float32)
    b2 = jnp.asarray(params["b2"], jnp.float32)
    b3 = jnp.asarray(params["b3"], jnp.float32)

    K, H = w1.shape
    O = w3.shape[1]
    Kp = _round_up(K, 256)     # contraction dims to 256-multiples (v6e/v7x MXU)
    Hp = _round_up(H, 256)
    Op = _round_up(O, 128)     # output lane-dense (unmasked vst)

    def pad2(a, rows, cols):
        r, c = a.shape
        return jnp.pad(a, ((0, rows - r), (0, cols - c)))

    return dict(
        w1=pad2(w1, Kp, Hp).astype(compute_dtype),
        b1=jnp.pad(b1, (0, Hp - H)).reshape(1, Hp),
        w2=pad2(w2, Hp, Hp).astype(compute_dtype),
        b2=jnp.pad(b2, (0, Hp - H)).reshape(1, Hp),
        w3=pad2(w3, Hp, Op).astype(compute_dtype),
        b3=jnp.pad(b3, (0, Op - O)).reshape(1, Op),
        in_dim=K,
        out_dim=O,
    )


def decoder_forward(x, prepped, *, block_m=512, out_dtype=jnp.float32):
    """x: (N, latent_dim) f32 -> (N, output_dim) f32, fully fused on-chip."""
    M, K = x.shape
    w1, b1 = prepped["w1"], prepped["b1"]
    w2, b2 = prepped["w2"], prepped["b2"]
    w3, b3 = prepped["w3"], prepped["b3"]
    assert K == prepped["in_dim"]
    Kp, Hp = w1.shape
    Op = w3.shape[1]
    O = prepped["out_dim"]

    # Row tile: multiple of 16 (bf16 sublane packing); >= 2 grid steps when the
    # batch allows so both v7x TensorCores get work (harmless on v5e/v6e).
    if M <= 16:
        bm = M
    else:
        bm = min(block_m, _round_up(pl.cdiv(M, 2), 16))
    mp = _round_up(M, bm)

    # Single combined pad (tail rows + feature dim to Kp).  No dtype cast here:
    # x is DMA'd as f32 and cast to bf16 inside the kernel.
    if mp != M or Kp != K:
        xw = jnp.pad(x, ((0, mp - M), (0, Kp - K)))
    else:
        xw = x

    # Explicit VMEM budget (pipelined x/out tiles + resident weights + slack)
    # so a larger output_dim cannot silently overflow v7x's 64 MiB VMEM.
    est = (2 * bm * Kp * 4 + 2 * bm * Op * 4
           + 2 * (w1.size + w2.size + w3.size) * jnp.dtype(w1.dtype).itemsize
           + 2 * (b1.size + b2.size + b3.size) * 4)
    vmem_limit = int(min(128 * 1024 * 1024, max(32 * 1024 * 1024, 3 * est)))

    out = pl.pallas_call(
        _decoder_kernel,
        out_shape=jax.ShapeDtypeStruct((mp, Op), out_dtype),
        grid=(mp // bm,),
        in_specs=[
            pl.BlockSpec((bm, Kp), lambda i: (i, 0)),   # x row tile (f32)
            pl.BlockSpec((Kp, Hp), lambda i: (0, 0)),   # W1 (bf16, resident)
            pl.BlockSpec((1, Hp), lambda i: (0, 0)),    # b1
            pl.BlockSpec((Hp, Hp), lambda i: (0, 0)),   # W2
            pl.BlockSpec((1, Hp), lambda i: (0, 0)),    # b2
            pl.BlockSpec((Hp, Op), lambda i: (0, 0)),   # W3
            pl.BlockSpec((1, Op), lambda i: (0, 0)),    # b3
        ],
        out_specs=pl.BlockSpec((bm, Op), lambda i: (i, 0)),
        compiler_params=pltpu.CompilerParams(
            dimension_semantics=("parallel",),          # megacore sharding
            vmem_limit_bytes=vmem_limit,
        ),
    )(xw, w1, b1, w2, b2, w3, b3)

    if mp != M or Op != O:
        out = out[:M, :O]
    return out


# ---------------------------------------------------------------------------
# Parameter init matching nn.Linear defaults and a pure-JAX reference.
# ---------------------------------------------------------------------------
def init_params(key, latent_dim, hidden_dim, output_dim):
    def linear_init(k, out_dim, in_dim):
        bound = 1.0 / jnp.sqrt(float(in_dim))
        kw, kb = jax.random.split(k)
        w = jax.random.uniform(kw, (out_dim, in_dim), jnp.float32, -bound, bound)
        b = jax.random.uniform(kb, (out_dim,), jnp.float32, -bound, bound)
        return w, b

    k1, k2, k3 = jax.random.split(key, 3)
    w1, b1 = linear_init(k1, hidden_dim, latent_dim)
    w2, b2 = linear_init(k2, hidden_dim, hidden_dim)
    w3, b3 = linear_init(k3, output_dim, hidden_dim)
    return dict(w1=w1, b1=b1, w2=w2, b2=b2, w3=w3, b3=b3)


def decoder_reference(x, params):
    def leaky(v):
        return jnp.where(v > 0.0, v, 0.2 * v)

    h = leaky(x @ params["w1"].T + params["b1"])
    h = leaky(h @ params["w2"].T + params["b2"])
    return jax.nn.sigmoid(h @ params["w3"].T + params["b3"])


if __name__ == "__main__":
    latent_dim, hidden_dim = 200, 400      # as in the original script
    output_dim = 512                       # data-dependent in the original

    key = jax.random.PRNGKey(0)
    k_params, k_x1, k_x2 = jax.random.split(key, 3)
    params = init_params(k_params, latent_dim, hidden_dim, output_dim)
    prepped = prepare_params(params)

    fwd = jax.jit(functools.partial(decoder_forward, prepped=prepped))

    ok = True
    for k_x, batch in ((k_x1, 8), (k_x2, 100)):   # single-block and multi-step
        x = jax.random.normal(k_x, (batch, latent_dim), dtype=jnp.float32)
        out = jax.block_until_ready(fwd(x))
        ref = decoder_reference(x, params)
        ok &= out.shape == (batch, output_dim) and out.dtype == jnp.float32
        ok &= bool(jnp.all(jnp.isfinite(out)))
        # bf16 MXU operands with f32 accumulation: loose tolerance on (0,1) out
        ok &= float(jnp.max(jnp.abs(out - ref))) < 5e-2

    assert ok
    print("KERNEL_OK")
</pallas_src>

<mosaic_0001>
module attributes {stable_mosaic.version = 11 : i64} {
  func.func @_decoder_kernel(%arg0: i32, %arg1: memref<8x256xf32, #tpu.memory_space<vmem>>, %arg2: memref<256x512xbf16, #tpu.memory_space<vmem>>, %arg3: memref<1x512xf32, #tpu.memory_space<vmem>>, %arg4: memref<512x512xbf16, #tpu.memory_space<vmem>>, %arg5: memref<1x512xf32, #tpu.memory_space<vmem>>, %arg6: memref<512x512xbf16, #tpu.memory_space<vmem>>, %arg7: memref<1x512xf32, #tpu.memory_space<vmem>>, %arg8: memref<8x512xf32, #tpu.memory_space<vmem>>) attributes {dimension_semantics = [#tpu.dimension_semantics<parallel>], iteration_bounds = array<i64: 1>, scalar_prefetch = 0 : i64, scratch_operands = 0 : i64, tpu.core_type = #tpu.core_type<tc>, window_params = [{transform_indices = @transform_0, window_bounds = array<i64: 8, 256>}, {pipeline_mode = #tpu.pipeline_mode<synchronous>, transform_indices = @transform_1, window_bounds = array<i64: 256, 512>}, {pipeline_mode = #tpu.pipeline_mode<synchronous>, transform_indices = @transform_2, window_bounds = array<i64: 1, 512>}, {pipeline_mode = #tpu.pipeline_mode<synchronous>, transform_indices = @transform_3, window_bounds = array<i64: 512, 512>}, {pipeline_mode = #tpu.pipeline_mode<synchronous>, transform_indices = @transform_4, window_bounds = array<i64: 1, 512>}, {pipeline_mode = #tpu.pipeline_mode<synchronous>, transform_indices = @transform_5, window_bounds = array<i64: 512, 512>}, {pipeline_mode = #tpu.pipeline_mode<synchronous>, transform_indices = @transform_6, window_bounds = array<i64: 1, 512>}, {transform_indices = @transform_7, window_bounds = array<i64: 8, 512>}]} {
    %c0 = arith.constant 0 : index
    %c0_0 = arith.constant 0 : index
    %0 = vector.load %arg1[%c0, %c0_0] : memref<8x256xf32, #tpu.memory_space<vmem>>, vector<8x256xf32>
    %1 = arith.truncf %0 : vector<8x256xf32> to vector<8x256xbf16>
    %c0_1 = arith.constant 0 : index
    %c0_2 = arith.constant 0 : index
    %2 = vector.load %arg2[%c0_1, %c0_2] : memref<256x512xbf16, #tpu.memory_space<vmem>>, vector<256x512xbf16>
    %cst = arith.constant dense<0.000000e+00> : vector<8x512xf32>
    %3 = tpu.matmul %1, %2, %cst {dimension_numbers = #tpu.dot_dimension_numbers<[1], [0], [0], [1], [0, 0, 1, 1], [], []>} : vector<8x256xbf16>, vector<256x512xbf16>, vector<8x512xf32> -> vector<8x512xf32>
    %c0_3 = arith.constant 0 : index
    %c0_4 = arith.constant 0 : index
    %4 = vector.load %arg3[%c0_3, %c0_4] : memref<1x512xf32, #tpu.memory_space<vmem>>, vector<1x512xf32>
    %5 = vector.broadcast %4 : vector<1x512xf32> to vector<8x512xf32>
    %6 = arith.addf %3, %5 : vector<8x512xf32>
    %cst_5 = arith.constant 0.000000e+00 : f32
    %7 = vector.broadcast %cst_5 : f32 to vector<8x512xf32>
    %8 = arith.cmpf ogt, %6, %7 : vector<8x512xf32>
    %cst_6 = arith.constant 2.000000e-01 : f32
    %9 = vector.broadcast %cst_6 : f32 to vector<8x512xf32>
    %10 = arith.mulf %9, %6 : vector<8x512xf32>
    %11 = arith.select %8, %6, %10 : vector<8x512xi1>, vector<8x512xf32>
    %12 = arith.truncf %11 : vector<8x512xf32> to vector<8x512xbf16>
    %c0_7 = arith.constant 0 : index
    %c0_8 = arith.constant 0 : index
    %13 = vector.load %arg4[%c0_7, %c0_8] : memref<512x512xbf16, #tpu.memory_space<vmem>>, vector<512x512xbf16>
    %cst_9 = arith.constant dense<0.000000e+00> : vector<8x512xf32>
    %14 = tpu.matmul %12, %13, %cst_9 {dimension_numbers = #tpu.dot_dimension_numbers<[1], [0], [0], [1], [0, 0, 1, 1], [], []>} : vector<8x512xbf16>, vector<512x512xbf16>, vector<8x512xf32> -> vector<8x512xf32>
    %c0_10 = arith.constant 0 : index
    %c0_11 = arith.constant 0 : index
    %15 = vector.load %arg5[%c0_10, %c0_11] : memref<1x512xf32, #tpu.memory_space<vmem>>, vector<1x512xf32>
    %16 = vector.broadcast %15 : vector<1x512xf32> to vector<8x512xf32>
    %17 = arith.addf %14, %16 : vector<8x512xf32>
    %cst_12 = arith.constant 0.000000e+00 : f32
    %18 = vector.broadcast %cst_12 : f32 to vector<8x512xf32>
    %19 = arith.cmpf ogt, %17, %18 : vector<8x512xf32>
    %cst_13 = arith.constant 2.000000e-01 : f32
    %20 = vector.broadcast %cst_13 : f32 to vector<8x512xf32>
    %21 = arith.mulf %20, %17 : vector<8x512xf32>
    %22 = arith.select %19, %17, %21 : vector<8x512xi1>, vector<8x512xf32>
    %23 = arith.truncf %22 : vector<8x512xf32> to vector<8x512xbf16>
    %c0_14 = arith.constant 0 : index
    %c0_15 = arith.constant 0 : index
    %24 = vector.load %arg6[%c0_14, %c0_15] : memref<512x512xbf16, #tpu.memory_space<vmem>>, vector<512x512xbf16>
    %cst_16 = arith.constant dense<0.000000e+00> : vector<8x512xf32>
    %25 = tpu.matmul %23, %24, %cst_16 {dimension_numbers = #tpu.dot_dimension_numbers<[1], [0], [0], [1], [0, 0, 1, 1], [], []>} : vector<8x512xbf16>, vector<512x512xbf16>, vector<8x512xf32> -> vector<8x512xf32>
    %c0_17 = arith.constant 0 : index
    %c0_18 = arith.constant 0 : index
    %26 = vector.load %arg7[%c0_17, %c0_18] : memref<1x512xf32, #tpu.memory_space<vmem>>, vector<1x512xf32>
    %27 = vector.broadcast %26 : vector<1x512xf32> to vector<8x512xf32>
    %28 = arith.addf %25, %27 : vector<8x512xf32>
    %29 = arith.negf %28 : vector<8x512xf32>
    %30 = math.exp %29 : vector<8x512xf32>
    %cst_19 = arith.constant 1.000000e+00 : f32
    %31 = vector.broadcast %cst_19 : f32 to vector<8x512xf32>
    %32 = arith.addf %31, %30 : vector<8x512xf32>
    %33 = arith.divf %31, %32 : vector<8x512xf32>
    %c0_20 = arith.constant 0 : index
    %c0_21 = arith.constant 0 : index
    %34 = vector.load %arg8[%c0_20, %c0_21] : memref<8x512xf32, #tpu.memory_space<vmem>>, vector<8x512xf32>
    tpu.vector_store %arg8[%c0_20, %c0_21], %33 {strides = array<i32>} : memref<8x512xf32, #tpu.memory_space<vmem>>, vector<8x512xf32>,
    return
  }
  func.func @transform_0(%arg0: i32) -> (i32, i32) {
    %c0_i32 = arith.constant 0 : i32
    %c0_i32_0 = arith.constant 0 : i32
    return %arg0, %c0_i32 : i32, i32
  }
  func.func @transform_1(%arg0: i32) -> (i32, i32) {
    %c0_i32 = arith.constant 0 : i32
    %c0_i32_0 = arith.constant 0 : i32
    %c0_i32_1 = arith.constant 0 : i32
    return %c0_i32, %c0_i32_0 : i32, i32
  }
  func.func @transform_2(%arg0: i32) -> (i32, i32) {
    %c0_i32 = arith.constant 0 : i32
    %c0_i32_0 = arith.constant 0 : i32
    %c0_i32_1 = arith.constant 0 : i32
    return %c0_i32, %c0_i32_0 : i32, i32
  }
  func.func @transform_3(%arg0: i32) -> (i32, i32) {
    %c0_i32 = arith.constant 0 : i32
    %c0_i32_0 = arith.constant 0 : i32
    %c0_i32_1 = arith.constant 0 : i32
    return %c0_i32, %c0_i32_0 : i32, i32
  }
  func.func @transform_4(%arg0: i32) -> (i32, i32) {
    %c0_i32 = arith.constant 0 : i32
    %c0_i32_0 = arith.constant 0 : i32
    %c0_i32_1 = arith.constant 0 : i32
    return %c0_i32, %c0_i32_0 : i32, i32
  }
  func.func @transform_5(%arg0: i32) -> (i32, i32) {
    %c0_i32 = arith.constant 0 : i32
    %c0_i32_0 = arith.constant 0 : i32
    %c0_i32_1 = arith.constant 0 : i32
    return %c0_i32, %c0_i32_0 : i32, i32
  }
  func.func @transform_6(%arg0: i32) -> (i32, i32) {
    %c0_i32 = arith.constant 0 : i32
    %c0_i32_0 = arith.constant 0 : i32
    %c0_i32_1 = arith.constant 0 : i32
    return %c0_i32, %c0_i32_0 : i32, i32
  }
  func.func @transform_7(%arg0: i32) -> (i32, i32) {
    %c0_i32 = arith.constant 0 : i32
    %c0_i32_0 = arith.constant 0 : i32
    return %arg0, %c0_i32 : i32, i32
  }
}

</mosaic_0001>

<llo_original>
// kernel: decoder_forward.1
$region0: #{decoder_forward.1}
  #allocation0 [shape = 'u32[]', space=smem, size = 0x4, offset = 0x4, fixed_abs, tag = 'smem constant byte address 0x4 - core index']
  #allocation1 [shape = 'u32[144,128]{1,0:T(1,128)}', space=vmem, size = 0x12000, scoped, tag = 'internal scratch']
  %s0 = inlined_call_operand.vmem [shape: f32[8,256], index: 0, kind: input, shape index: {}]
  %s1 = inlined_call_operand.vmem [shape: bf16[256,512], index: 1, kind: input, shape index: {}]
  %s2 = inlined_call_operand.vmem [shape: f32[1,512], index: 2, kind: input, shape index: {}]
  %s3 = inlined_call_operand.vmem [shape: bf16[512,512], index: 3, kind: input, shape index: {}]
  %s4 = inlined_call_operand.vmem [shape: f32[1,512], index: 4, kind: input, shape index: {}]
  %s5 = inlined_call_operand.vmem [shape: bf16[512,512], index: 5, kind: input, shape index: {}]
  %s6 = inlined_call_operand.vmem [shape: f32[1,512], index: 6, kind: input, shape index: {}]
  %s7 = inlined_call_operand.hbm [shape: f32[8,512], index: 7, kind: output, shape index: {}]
  %s8 = sld [smem:[#allocation0]]
  $region38: #{decoder_forward.1} parent=0
    _
  %s10 = ssub.s32 1, %s8
  %s11 = scalar_select 0, %s10, %s8
  $region1: #{decoder_forward.1} parent=0
    #allocation2 [shape = 'u8[16384]{0}', space=vmem, size = 0x4000, scoped, tag = 'output window, operand 0, single buffered']
    #allocation3 [shape = 's32[1]{0}', space=sflag, size = 0x4, scoped, tag = 'scoped memory for decoder_forward.1']
    %12 = vsyncpa [#allocation3], 0
    // Predicated region
    $region2: #{decoder_forward.1} parent=1 // pred_check
      _
    $region3: #{decoder_forward.1} parent=1 // pred_check_branch
      %14 = sbr.rel (0) target = $region5
    $region4: #{decoder_forward.1} parent=1 // pred_region
      _
    $region5: #{decoder_forward.1} parent=1 // pred_fallthru
      _
    // Predicated region
    $region6: #{decoder_forward.1} parent=1 // pred_check
      _
    $region7: #{decoder_forward.1} parent=1 // pred_check_branch
      %16 = sbr.rel (0) target = $region9
    $region8: #{decoder_forward.1} parent=1 // pred_region
      _
    $region9: #{decoder_forward.1} parent=1 // pred_fallthru
      _
    // Predicated region
    $region10: #{decoder_forward.1} parent=1 // pred_check
      _
    $region11: #{decoder_forward.1} parent=1 // pred_check_branch
      %18 = sbr.rel (0) target = $region13
    $region12: #{decoder_forward.1} parent=1 // pred_region
      _
    $region13: #{decoder_forward.1} parent=1 // pred_fallthru
      _
    // Predicated region
    $region14: #{decoder_forward.1} parent=1 // pred_check
      _
    $region15: #{decoder_forward.1} parent=1 // pred_check_branch
      %20 = sbr.rel (0) target = $region17
    $region16: #{decoder_forward.1} parent=1 // pred_region
      _
    $region17: #{decoder_forward.1} parent=1 // pred_fallthru
      _
    // Predicated region
    $region18: #{decoder_forward.1} parent=1 // pred_check
      _
    $region19: #{decoder_forward.1} parent=1 // pred_check_branch
      %22 = sbr.rel (0) target = $region21
    $region20: #{decoder_forward.1} parent=1 // pred_region
      _
    $region21: #{decoder_forward.1} parent=1 // pred_fallthru
      _
    // Predicated region
    $region22: #{decoder_forward.1} parent=1 // pred_check
      _
    $region23: #{decoder_forward.1} parent=1 // pred_check_branch
      %24 = sbr.rel (0) target = $region25
    $region24: #{decoder_forward.1} parent=1 // pred_region
      _
    $region25: #{decoder_forward.1} parent=1 // pred_fallthru
      _
    // Predicated region
    $region26: #{decoder_forward.1} parent=1 // pred_check
      _
    $region27: #{decoder_forward.1} parent=1 // pred_check_branch
      %26 = sbr.rel (0) target = $region29
    $region28: #{decoder_forward.1} parent=1 // pred_region
      _
    $region29: #{decoder_forward.1} parent=1 // pred_fallthru
      _
    %v27 = vld [vmem:[%s0] sm:$0xff]
    %v28 = vld [vmem:[%s0 + $0x8] sm:$0xff]
    %v29 = vpack.c.bf16 %v27, %v27
    %v30 = vpack.c.bf16 %v28, %v28
    %v31 = vld [vmem:[%s1] sm:$0xff]
    %v32 = vld [vmem:[%s1 + $0x8] sm:$0xff]
    %v33 = vld [vmem:[%s1 + $0x10] sm:$0xff]
    %v34 = vld [vmem:[%s1 + $0x18] sm:$0xff]
    %v35 = vld [vmem:[%s1 + $0x20] sm:$0xff]
    %v36 = vld [vmem:[%s1 + $0x28] sm:$0xff]
    %v37 = vld [vmem:[%s1 + $0x30] sm:$0xff]
    %v38 = vld [vmem:[%s1 + $0x38] sm:$0xff]
    %v39 = vld [vmem:[%s1 + $0x40] sm:$0xff]
    %v40 = vld [vmem:[%s1 + $0x48] sm:$0xff]
    %v41 = vld [vmem:[%s1 + $0x50] sm:$0xff]
    %v42 = vld [vmem:[%s1 + $0x58] sm:$0xff]
    %v43 = vld [vmem:[%s1 + $0x60] sm:$0xff]
    %v44 = vld [vmem:[%s1 + $0x68] sm:$0xff]
    %v45 = vld [vmem:[%s1 + $0x70] sm:$0xff]
    %v46 = vld [vmem:[%s1 + $0x78] sm:$0xff]
    %v47 = vld [vmem:[%s1 + $0x80] sm:$0xff]
    %v48 = vld [vmem:[%s1 + $0x88] sm:$0xff]
    %v49 = vld [vmem:[%s1 + $0x90] sm:$0xff]
    %v50 = vld [vmem:[%s1 + $0x98] sm:$0xff]
    %v51 = vld [vmem:[%s1 + $0xa0] sm:$0xff]
    %v52 = vld [vmem:[%s1 + $0xa8] sm:$0xff]
    %v53 = vld [vmem:[%s1 + $0xb0] sm:$0xff]
    %v54 = vld [vmem:[%s1 + $0xb8] sm:$0xff]
    %v55 = vld [vmem:[%s1 + $0xc0] sm:$0xff]
    %v56 = vld [vmem:[%s1 + $0xc8] sm:$0xff]
    %v57 = vld [vmem:[%s1 + $0xd0] sm:$0xff]
    %v58 = vld [vmem:[%s1 + $0xd8] sm:$0xff]
    %v59 = vld [vmem:[%s1 + $0xe0] sm:$0xff]
    %v60 = vld [vmem:[%s1 + $0xe8] sm:$0xff]
    %v61 = vld [vmem:[%s1 + $0xf0] sm:$0xff]
    %v62 = vld [vmem:[%s1 + $0xf8] sm:$0xff]
    %v63 = vld [vmem:[%s1 + $0x100] sm:$0xff]
    %v64 = vld [vmem:[%s1 + $0x108] sm:$0xff]
    %v65 = vld [vmem:[%s1 + $0x110] sm:$0xff]
    %v66 = vld [vmem:[%s1 + $0x118] sm:$0xff]
    %v67 = vld [vmem:[%s1 + $0x120] sm:$0xff]
    %v68 = vld [vmem:[%s1 + $0x128] sm:$0xff]
    %v69 = vld [vmem:[%s1 + $0x130] sm:$0xff]
    %v70 = vld [vmem:[%s1 + $0x138] sm:$0xff]
    %v71 = vld [vmem:[%s1 + $0x140] sm:$0xff]
    %v72 = vld [vmem:[%s1 + $0x148] sm:$0xff]
    %v73 = vld [vmem:[%s1 + $0x150] sm:$0xff]
    %v74 = vld [vmem:[%s1 + $0x158] sm:$0xff]
    %v75 = vld [vmem:[%s1 + $0x160] sm:$0xff]
    %v76 = vld [vmem:[%s1 + $0x168] sm:$0xff]
    %v77 = vld [vmem:[%s1 + $0x170] sm:$0xff]
    %v78 = vld [vmem:[%s1 + $0x178] sm:$0xff]
    %v79 = vld [vmem:[%s1 + $0x180] sm:$0xff]
    %v80 = vld [vmem:[%s1 + $0x188] sm:$0xff]
    %v81 = vld [vmem:[%s1 + $0x190] sm:$0xff]
    %v82 = vld [vmem:[%s1 + $0x198] sm:$0xff]
    %v83 = vld [vmem:[%s1 + $0x1a0] sm:$0xff]
    %v84 = vld [vmem:[%s1 + $0x1a8] sm:$0xff]
    %v85 = vld [vmem:[%s1 + $0x1b0] sm:$0xff]
    %v86 = vld [vmem:[%s1 + $0x1b8] sm:$0xff]
    %v87 = vld [vmem:[%s1 + $0x1c0] sm:$0xff]
    %v88 = vld [vmem:[%s1 + $0x1c8] sm:$0xff]
    %v89 = vld [vmem:[%s1 + $0x1d0] sm:$0xff]
    %v90 = vld [vmem:[%s1 + $0x1d8] sm:$0xff]
    %v91 = vld [vmem:[%s1 + $0x1e0] sm:$0xff]
    %v92 = vld [vmem:[%s1 + $0x1e8] sm:$0xff]
    %v93 = vld [vmem:[%s1 + $0x1f0] sm:$0xff]
    %v94 = vld [vmem:[%s1 + $0x1f8] sm:$0xff]
    %v95 = vld [vmem:[%s2] sm:$0xf]
    %v97 = vlaneseq
    %v98 = vshrl.u32 %v97, 7
    %v99 = vsub.s32 0, %v98
    %v100 = vrot.slane %v95, %v99
    %v101 = vlaneseq
    %v102 = vshrl.u32 %v101, 7
    %v103 = vsub.s32 1, %v102
    %v104 = vrot.slane %v95, %v103
    %v105 = vlaneseq
    %v106 = vshrl.u32 %v105, 7
    %v107 = vsub.s32 2, %v106
    %v108 = vrot.slane %v95, %v107
    %v109 = vlaneseq
    %v110 = vshrl.u32 %v109, 7
    %v111 = vsub.s32 3, %v110
    %v112 = vrot.slane %v95, %v111
    %v181 = vunpack.c.l.b16 %v31
    %v182 = vunpack.c.h.b16 %v31
    %v183 = vunpack.c.l.b16 %v32
    %v184 = vunpack.c.h.b16 %v32
    %v185 = vunpack.c.l.b16 %v33
    %v186 = vunpack.c.h.b16 %v33
    %v187 = vunpack.c.l.b16 %v34
    %v188 = vunpack.c.h.b16 %v34
    %v189 = vunpack.c.l.b16 %v35
    %v190 = vunpack.c.h.b16 %v35
    %v191 = vunpack.c.l.b16 %v36
    %v192 = vunpack.c.h.b16 %v36
    %v193 = vunpack.c.l.b16 %v37
    %v194 = vunpack.c.h.b16 %v37
    %v195 = vunpack.c.l.b16 %v38
    %v196 = vunpack.c.h.b16 %v38
    %v197 = vunpack.c.l.b16 %v39
    %v198 = vunpack.c.h.b16 %v39
    %v199 = vunpack.c.l.b16 %v40
    %v200 = vunpack.c.h.b16 %v40
    %v201 = vunpack.c.l.b16 %v41
    %v202 = vunpack.c.h.b16 %v41
    %v203 = vunpack.c.l.b16 %v42
    %v204 = vunpack.c.h.b16 %v42
    %v205 = vunpack.c.l.b16 %v43
    %v206 = vunpack.c.h.b16 %v43
    %v207 = vunpack.c.l.b16 %v44
    %v208 = vunpack.c.h.b16 %v44
    %v209 = vunpack.c.l.b16 %v45
    %v210 = vunpack.c.h.b16 %v45
    %v211 = vunpack.c.l.b16 %v46
    %v212 = vunpack.c.h.b16 %v46
    %v213 = vunpack.c.l.b16 %v47
    %v214 = vunpack.c.h.b16 %v47
    %v215 = vunpack.c.l.b16 %v48
    %v216 = vunpack.c.h.b16 %v48
    %v217 = vunpack.c.l.b16 %v49
    %v218 = vunpack.c.h.b16 %v49
    %v219 = vunpack.c.l.b16 %v50
    %v220 = vunpack.c.h.b16 %v50
    %v221 = vunpack.c.l.b16 %v51
    %v222 = vunpack.c.h.b16 %v51
    %v223 = vunpack.c.l.b16 %v52
    %v224 = vunpack.c.h.b16 %v52
    %v225 = vunpack.c.l.b16 %v53
    %v226 = vunpack.c.h.b16 %v53
    %v227 = vunpack.c.l.b16 %v54
    %v228 = vunpack.c.h.b16 %v54
    %v229 = vunpack.c.l.b16 %v55
    %v230 = vunpack.c.h.b16 %v55
    %v231 = vunpack.c.l.b16 %v56
    %v232 = vunpack.c.h.b16 %v56
    %v233 = vunpack.c.l.b16 %v57
    %v234 = vunpack.c.h.b16 %v57
    %v235 = vunpack.c.l.b16 %v58
    %v236 = vunpack.c.h.b16 %v58
    %v237 = vunpack.c.l.b16 %v59
    %v238 = vunpack.c.h.b16 %v59
    %v239 = vunpack.c.l.b16 %v60
    %v240 = vunpack.c.h.b16 %v60
    %v241 = vunpack.c.l.b16 %v61
    %v242 = vunpack.c.h.b16 %v61
    %v243 = vunpack.c.l.b16 %v62
    %v244 = vunpack.c.h.b16 %v62
    %v245 = vunpack.c.l.b16 %v63
    %v246 = vunpack.c.h.b16 %v63
    %v247 = vunpack.c.l.b16 %v64
    %v248 = vunpack.c.h.b16 %v64
    %v249 = vunpack.c.l.b16 %v65
    %v250 = vunpack.c.h.b16 %v65
    %v251 = vunpack.c.l.b16 %v66
    %v252 = vunpack.c.h.b16 %v66
    %v253 = vunpack.c.l.b16 %v67
    %v254 = vunpack.c.h.b16 %v67
    %v255 = vunpack.c.l.b16 %v68
    %v256 = vunpack.c.h.b16 %v68
    %v257 = vunpack.c.l.b16 %v69
    %v258 = vunpack.c.h.b16 %v69
    %v259 = vunpack.c.l.b16 %v70
    %v260 = vunpack.c.h.b16 %v70
    %v261 = vunpack.c.l.b16 %v71
    %v262 = vunpack.c.h.b16 %v71
    %v263 = vunpack.c.l.b16 %v72
    %v264 = vunpack.c.h.b16 %v72
    %v265 = vunpack.c.l.b16 %v73
    %v266 = vunpack.c.h.b16 %v73
    %v267 = vunpack.c.l.b16 %v74
    %v268 = vunpack.c.h.b16 %v74
    %v269 = vunpack.c.l.b16 %v75
    %v270 = vunpack.c.h.b16 %v75
    %v271 = vunpack.c.l.b16 %v76
    %v272 = vunpack.c.h.b16 %v76
    %v273 = vunpack.c.l.b16 %v77
    %v274 = vunpack.c.h.b16 %v77
    %v275 = vunpack.c.l.b16 %v78
    %v276 = vunpack.c.h.b16 %v78
    %v277 = vunpack.c.l.b16 %v79
    %v278 = vunpack.c.h.b16 %v79
    %v279 = vunpack.c.l.b16 %v80
    %v280 = vunpack.c.h.b16 %v80
    %v281 = vunpack.c.l.b16 %v81
    %v282 = vunpack.c.h.b16 %v81
    %v283 = vunpack.c.l.b16 %v82
    %v284 = vunpack.c.h.b16 %v82
    %v285 = vunpack.c.l.b16 %v83
    %v286 = vunpack.c.h.b16 %v83
    %v287 = vunpack.c.l.b16 %v84
    %v288 = vunpack.c.h.b16 %v84
    %v289 = vunpack.c.l.b16 %v85
    %v290 = vunpack.c.h.b16 %v85
    %v291 = vunpack.c.l.b16 %v86
    %v292 = vunpack.c.h.b16 %v86
    %v293 = vunpack.c.l.b16 %v87
    %v294 = vunpack.c.h.b16 %v87
    %v295 = vunpack.c.l.b16 %v88
    %v296 = vunpack.c.h.b16 %v88
    %v297 = vunpack.c.l.b16 %v89
    %v298 = vunpack.c.h.b16 %v89
    %v299 = vunpack.c.l.b16 %v90
    %v300 = vunpack.c.h.b16 %v90
    %v301 = vunpack.c.l.b16 %v91
    %v302 = vunpack.c.h.b16 %v91
    %v303 = vunpack.c.l.b16 %v92
    %v304 = vunpack.c.h.b16 %v92
    %v305 = vunpack.c.l.b16 %v93
    %v306 = vunpack.c.h.b16 %v93
    %v307 = vunpack.c.l.b16 %v94
    %v308 = vunpack.c.h.b16 %v94
    %v309 = vpack.c.b16 %v185, %v181
    %v310 = vpack.c.b16 %v186, %v182
    %v311 = vpack.c.b16 %v187, %v183
    %v312 = vpack.c.b16 %v188, %v184
    %v313 = vpack.c.b16 %v193, %v189
    %v314 = vpack.c.b16 %v194, %v190
    %v315 = vpack.c.b16 %v195, %v191
    %v316 = vpack.c.b16 %v196, %v192
    %v317 = vpack.c.b16 %v201, %v197
    %v318 = vpack.c.b16 %v202, %v198
    %v319 = vpack.c.b16 %v203, %v199
    %v320 = vpack.c.b16 %v204, %v200
    %v321 = vpack.c.b16 %v209, %v205
    %v322 = vpack.c.b16 %v210, %v206
    %v323 = vpack.c.b16 %v211, %v207
    %v324 = vpack.c.b16 %v212, %v208
    %v325 = vpack.c.b16 %v217, %v213
    %v326 = vpack.c.b16 %v218, %v214
    %v327 = vpack.c.b16 %v219, %v215
    %v328 = vpack.c.b16 %v220, %v216
    %v329 = vpack.c.b16 %v225, %v221
    %v330 = vpack.c.b16 %v226, %v222
    %v331 = vpack.c.b16 %v227, %v223
    %v332 = vpack.c.b16 %v228, %v224
    %v333 = vpack.c.b16 %v233, %v229
    %v334 = vpack.c.b16 %v234, %v230
    %v335 = vpack.c.b16 %v235, %v231
    %v336 = vpack.c.b16 %v236, %v232
    %v337 = vpack.c.b16 %v241, %v237
    %v338 = vpack.c.b16 %v242, %v238
    %v339 = vpack.c.b16 %v243, %v239
    %v340 = vpack.c.b16 %v244, %v240
    %v341 = vpack.c.b16 %v249, %v245
    %v342 = vpack.c.b16 %v250, %v246
    %v343 = vpack.c.b16 %v251, %v247
    %v344 = vpack.c.b16 %v252, %v248
    %v345 = vpack.c.b16 %v257, %v253
    %v346 = vpack.c.b16 %v258, %v254
    %v347 = vpack.c.b16 %v259, %v255
    %v348 = vpack.c.b16 %v260, %v256
    %v349 = vpack.c.b16 %v265, %v261
    %v350 = vpack.c.b16 %v266, %v262
    %v351 = vpack.c.b16 %v267, %v263
    %v352 = vpack.c.b16 %v268, %v264
    %v353 = vpack.c.b16 %v273, %v269
    %v354 = vpack.c.b16 %v274, %v270
    %v355 = vpack.c.b16 %v275, %v271
    %v356 = vpack.c.b16 %v276, %v272
    %v357 = vpack.c.b16 %v281, %v277
    %v358 = vpack.c.b16 %v282, %v278
    %v359 = vpack.c.b16 %v283, %v279
    %v360 = vpack.c.b16 %v284, %v280
    %v361 = vpack.c.b16 %v289, %v285
    %v362 = vpack.c.b16 %v290, %v286
    %v363 = vpack.c.b16 %v291, %v287
    %v364 = vpack.c.b16 %v292, %v288
    %v365 = vpack.c.b16 %v297, %v293
    %v366 = vpack.c.b16 %v298, %v294
    %v367 = vpack.c.b16 %v299, %v295
    %v368 = vpack.c.b16 %v300, %v296
    %v369 = vpack.c.b16 %v305, %v301
    %v370 = vpack.c.b16 %v306, %v302
    %v371 = vpack.c.b16 %v307, %v303
    %v372 = vpack.c.b16 %v308, %v304
    %437 = vmatprep.subr.bf16.mxu0 %v310
    %438 = vmatpush1.bf16.msra.mxu0 %v309
    %439 = vmatprep.subr.bf16.mxu0 %v314
    %440 = vmatpush1.bf16.msra.mxu0 %v313
    %441 = vmatprep.subr.bf16.mxu0 %v318
    %442 = vmatpush1.bf16.msra.mxu0 %v317
    %443 = vmatprep.subr.bf16.mxu0 %v322
    %444 = vmatpush1.bf16.msra.mxu0 %v321
    %445 = vmatprep.subr.bf16.mxu0 %v326
    %446 = vmatpush1.bf16.msra.mxu0 %v325
    %447 = vmatprep.subr.bf16.mxu0 %v330
    %448 = vmatpush1.bf16.msra.mxu0 %v329
    %449 = vmatprep.subr.bf16.mxu0 %v334
    %450 = vmatpush1.bf16.msra.mxu0 %v333
    %451 = vmatprep.subr.bf16.mxu0 %v338
    %452 = vmatpush1.bf16.msra.mxu0 %v337
    %453 = vmatprep.subr.bf16.mxu0 %v342
    %454 = vmatpush1.bf16.msra.mxu0 %v341
    %455 = vmatprep.subr.bf16.mxu0 %v346
    %456 = vmatpush1.bf16.msra.mxu0 %v345
    %457 = vmatprep.subr.bf16.mxu0 %v350
    %458 = vmatpush1.bf16.msra.mxu0 %v349
    %459 = vmatprep.subr.bf16.mxu0 %v354
    %460 = vmatpush1.bf16.msra.mxu0 %v353
    %461 = vmatprep.subr.bf16.mxu0 %v358
    %462 = vmatpush1.bf16.msra.mxu0 %v357
    %463 = vmatprep.subr.bf16.mxu0 %v362
    %464 = vmatpush1.bf16.msra.mxu0 %v361
    %465 = vmatprep.subr.bf16.mxu0 %v366
    %466 = vmatpush1.bf16.msra.mxu0 %v365
    %467 = vmatprep.subr.bf16.mxu0 %v370
    %468 = vmatpush1.bf16.msra.mxu0 %v369
    %469 = vmatprep.mubr.bf16.mxu0 %v30
    %470 = vmatmul.mubr.bf16.gmra.mrb[0].mxu0 %v29
    %v471 = vpop.f32.mrb[0].mxu0
    %v472 = vadd.f32 %v100, %v471
    %v473 = vpop.f32.mrb[0].mxu0
    %v474 = vadd.f32 %v104, %v473
    %v475 = vpop.f32.mrb[0].mxu0
    %v476 = vpop.f32.mrb[0].mxu0
    %477 = vdwg.mxu0
    %478 = vmatprep.subr.bf16.mxu0 %v312
    %479 = vmatpush1.bf16.msra.mxu0 %v311
    %480 = vmatprep.subr.bf16.mxu0 %v316
    %481 = vmatpush1.bf16.msra.mxu0 %v315
    %482 = vmatprep.subr.bf16.mxu0 %v320
    %483 = vmatpush1.bf16.msra.mxu0 %v319
    %484 = vmatprep.subr.bf16.mxu0 %v324
    %485 = vmatpush1.bf16.msra.mxu0 %v323
    %486 = vmatprep.subr.bf16.mxu0 %v328
    %487 = vmatpush1.bf16.msra.mxu0 %v327
    %488 = vmatprep.subr.bf16.mxu0 %v332
    %489 = vmatpush1.bf16.msra.mxu0 %v331
    %490 = vmatprep.subr.bf16.mxu0 %v336
    %491 = vmatpush1.bf16.msra.mxu0 %v335
    %492 = vmatprep.subr.bf16.mxu0 %v340
    %493 = vmatpush1.bf16.msra.mxu0 %v339
    %494 = vmatprep.subr.bf16.mxu0 %v344
    %495 = vmatpush1.bf16.msra.mxu0 %v343
    %496 = vmatprep.subr.bf16.mxu0 %v348
    %497 = vmatpush1.bf16.msra.mxu0 %v347
    %498 = vmatprep.subr.bf16.mxu0 %v352
    %499 = vmatpush1.bf16.msra.mxu0 %v351
    %500 = vmatprep.subr.bf16.mxu0 %v356
    %501 = vmatpush1.bf16.msra.mxu0 %v355
    %502 = vmatprep.subr.bf16.mxu0 %v360
    %503 = vmatpush1.bf16.msra.mxu0 %v359
    %504 = vmatprep.subr.bf16.mxu0 %v364
    %505 = vmatpush1.bf16.msra.mxu0 %v363
    %506 = vmatprep.subr.bf16.mxu0 %v368
    %507 = vmatpush1.bf16.msra.mxu0 %v367
    %508 = vmatprep.subr.bf16.mxu0 %v372
    %509 = vmatpush1.bf16.msra.mxu0 %v371
    %510 = vmatprep.mubr.bf16.mxu0 %v30
    %511 = vmatmul.mubr.bf16.gmra.mrb[0].mxu0 %v29
    %v512 = vpop.f32.mrb[0].mxu0
    %v513 = vadd.f32 %v108, %v512
    %v514 = vpop.f32.mrb[0].mxu0
    %v515 = vadd.f32 %v112, %v514
    %v516 = vpop.f32.mrb[0].mxu0
    %v517 = vpop.f32.mrb[0].mxu0
    %518 = vdwg.mxu0
    %vm519 = vcmp.gt.f32.partialorder %v472, 0.0
    %vm520 = vcmp.gt.f32.partialorder %v474, 0.0
    %vm521 = vcmp.gt.f32.partialorder %v513, 0.0
    %vm522 = vcmp.gt.f32.partialorder %v515, 0.0
    %v523 = vmul.f32 %v472, 0.2
    %v524 = vmul.f32 %v474, 0.2
    %v525 = vmul.f32 %v513, 0.2
    %v526 = vmul.f32 %v515, 0.2
    %v527 = vsel %vm519, %v472, %v523
    %v528 = vsel %vm520, %v474, %v524
    %v529 = vsel %vm521, %v513, %v525
    %v530 = vsel %vm522, %v515, %v526
    %v531 = vpack.c.bf16 %v527, %v527
    %v532 = vpack.c.bf16 %v528, %v528
    %v533 = vpack.c.bf16 %v529, %v529
    %v534 = vpack.c.bf16 %v530, %v530
    %v535 = vld [vmem:[%s3] sm:$0xff]
    %v536 = vld [vmem:[%s3 + $0x8] sm:$0xff]
    %v537 = vld [vmem:[%s3 + $0x10] sm:$0xff]
    %v538 = vld [vmem:[%s3 + $0x18] sm:$0xff]
    %v539 = vld [vmem:[%s3 + $0x20] sm:$0xff]
    %v540 = vld [vmem:[%s3 + $0x28] sm:$0xff]
    %v541 = vld [vmem:[%s3 + $0x30] sm:$0xff]
    %v542 = vld [vmem:[%s3 + $0x38] sm:$0xff]
    %v543 = vld [vmem:[%s3 + $0x40] sm:$0xff]
    %v544 = vld [vmem:[%s3 + $0x48] sm:$0xff]
    %v545 = vld [vmem:[%s3 + $0x50] sm:$0xff]
    %v546 = vld [vmem:[%s3 + $0x58] sm:$0xff]
    %v547 = vld [vmem:[%s3 + $0x60] sm:$0xff]
    %v548 = vld [vmem:[%s3 + $0x68] sm:$0xff]
    %v549 = vld [vmem:[%s3 + $0x70] sm:$0xff]
    %v550 = vld [vmem:[%s3 + $0x78] sm:$0xff]
    %v551 = vld [vmem:[%s3 + $0x80] sm:$0xff]
    %v552 = vld [vmem:[%s3 + $0x88] sm:$0xff]
    %v553 = vld [vmem:[%s3 + $0x90] sm:$0xff]
    %v554 = vld [vmem:[%s3 + $0x98] sm:$0xff]
    %v555 = vld [vmem:[%s3 + $0xa0] sm:$0xff]
    %v556 = vld [vmem:[%s3 + $0xa8] sm:$0xff]
    %v557 = vld [vmem:[%s3 + $0xb0] sm:$0xff]
    %v558 = vld [vmem:[%s3 + $0xb8] sm:$0xff]
    %v559 = vld [vmem:[%s3 + $0xc0] sm:$0xff]
    %v560 = vld [vmem:[%s3 + $0xc8] sm:$0xff]
    %v561 = vld [vmem:[%s3 + $0xd0] sm:$0xff]
    %v562 = vld [vmem:[%s3 + $0xd8] sm:$0xff]
    %v563 = vld [vmem:[%s3 + $0xe0] sm:$0xff]
    %v564 = vld [vmem:[%s3 + $0xe8] sm:$0xff]
    %v565 = vld [vmem:[%s3 + $0xf0] sm:$0xff]
    %v566 = vld [vmem:[%s3 + $0xf8] sm:$0xff]
    %v567 = vld [vmem:[%s3 + $0x100] sm:$0xff]
    %v568 = vld [vmem:[%s3 + $0x108] sm:$0xff]
    %v569 = vld [vmem:[%s3 + $0x110] sm:$0xff]
    %v570 = vld [vmem:[%s3 + $0x118] sm:$0xff]
    %v571 = vld [vmem:[%s3 + $0x120] sm:$0xff]
    %v572 = vld [vmem:[%s3 + $0x128] sm:$0xff]
    %v573 = vld [vmem:[%s3 + $0x130] sm:$0xff]
    %v574 = vld [vmem:[%s3 + $0x138] sm:$0xff]
    %v575 = vld [vmem:[%s3 + $0x140] sm:$0xff]
    %v576 = vld [vmem:[%s3 + $0x148] sm:$0xff]
    %v577 = vld [vmem:[%s3 + $0x150] sm:$0xff]
    %v578 = vld [vmem:[%s3 + $0x158] sm:$0xff]
    %v579 = vld [vmem:[%s3 + $0x160] sm:$0xff]
    %v580 = vld [vmem:[%s3 + $0x168] sm:$0xff]
    %v581 = vld [vmem:[%s3 + $0x170] sm:$0xff]
    %v582 = vld [vmem:[%s3 + $0x178] sm:$0xff]
    %v583 = vld [vmem:[%s3 + $0x180] sm:$0xff]
    %v584 = vld [vmem:[%s3 + $0x188] sm:$0xff]
    %v585 = vld [vmem:[%s3 + $0x190] sm:$0xff]
    %v586 = vld [vmem:[%s3 + $0x198] sm:$0xff]
    %v587 = vld [vmem:[%s3 + $0x1a0] sm:$0xff]
    %v588 = vld [vmem:[%s3 + $0x1a8] sm:$0xff]
    %v589 = vld [vmem:[%s3 + $0x1b0] sm:$0xff]
    %v590 = vld [vmem:[%s3 + $0x1b8] sm:$0xff]
    %v591 = vld [vmem:[%s3 + $0x1c0] sm:$0xff]
    %v592 = vld [vmem:[%s3 + $0x1c8] sm:$0xff]
    %v593 = vld [vmem:[%s3 + $0x1d0] sm:$0xff]
    %v594 = vld [vmem:[%s3 + $0x1d8] sm:$0xff]
    %v595 = vld [vmem:[%s3 + $0x1e0] sm:$0xff]
    %v596 = vld [vmem:[%s3 + $0x1e8] sm:$0xff]
    %v597 = vld [vmem:[%s3 + $0x1f0] sm:$0xff]
    %v598 = vld [vmem:[%s3 + $0x1f8] sm:$0xff]
    %v599 = vld [vmem:[%s3 + $0x200] sm:$0xff]
    %v600 = vld [vmem:[%s3 + $0x208] sm:$0xff]
    %v601 = vld [vmem:[%s3 + $0x210] sm:$0xff]
    %v602 = vld [vmem:[%s3 + $0x218] sm:$0xff]
    %v603 = vld [vmem:[%s3 + $0x220] sm:$0xff]
    %v604 = vld [vmem:[%s3 + $0x228] sm:$0xff]
    %v605 = vld [vmem:[%s3 + $0x230] sm:$0xff]
    %v606 = vld [vmem:[%s3 + $0x238] sm:$0xff]
    %v607 = vld [vmem:[%s3 + $0x240] sm:$0xff]
    %v608 = vld [vmem:[%s3 + $0x248] sm:$0xff]
    %v609 = vld [vmem:[%s3 + $0x250] sm:$0xff]
    %v610 = vld [vmem:[%s3 + $0x258] sm:$0xff]
    %v611 = vld [vmem:[%s3 + $0x260] sm:$0xff]
    %v612 = vld [vmem:[%s3 + $0x268] sm:$0xff]
    %v613 = vld [vmem:[%s3 + $0x270] sm:$0xff]
    %v614 = vld [vmem:[%s3 + $0x278] sm:$0xff]
    %v615 = vld [vmem:[%s3 + $0x280] sm:$0xff]
    %v616 = vld [vmem:[%s3 + $0x288] sm:$0xff]
    %v617 = vld [vmem:[%s3 + $0x290] sm:$0xff]
    %v618 = vld [vmem:[%s3 + $0x298] sm:$0xff]
    %v619 = vld [vmem:[%s3 + $0x2a0] sm:$0xff]
    %v620 = vld [vmem:[%s3 + $0x2a8] sm:$0xff]
    %v621 = vld [vmem:[%s3 + $0x2b0] sm:$0xff]
    %v622 = vld [vmem:[%s3 + $0x2b8] sm:$0xff]
    %v623 = vld [vmem:[%s3 + $0x2c0] sm:$0xff]
    %v624 = vld [vmem:[%s3 + $0x2c8] sm:$0xff]
    %v625 = vld [vmem:[%s3 + $0x2d0] sm:$0xff]
    %v626 = vld [vmem:[%s3 + $0x2d8] sm:$0xff]
    %v627 = vld [vmem:[%s3 + $0x2e0] sm:$0xff]
    %v628 = vld [vmem:[%s3 + $0x2e8] sm:$0xff]
    %v629 = vld [vmem:[%s3 + $0x2f0] sm:$0xff]
    %v630 = vld [vmem:[%s3 + $0x2f8] sm:$0xff]
    %v631 = vld [vmem:[%s3 + $0x300] sm:$0xff]
    %v632 = vld [vmem:[%s3 + $0x308] sm:$0xff]
    %v633 = vld [vmem:[%s3 + $0x310] sm:$0xff]
    %v634 = vld [vmem:[%s3 + $0x318] sm:$0xff]
    %v635 = vld [vmem:[%s3 + $0x320] sm:$0xff]
    %v636 = vld [vmem:[%s3 + $0x328] sm:$0xff]
    %v637 = vld [vmem:[%s3 + $0x330] sm:$0xff]
    %v638 = vld [vmem:[%s3 + $0x338] sm:$0xff]
    %v639 = vld [vmem:[%s3 + $0x340] sm:$0xff]
    %v640 = vld [vmem:[%s3 + $0x348] sm:$0xff]
    %v641 = vld [vmem:[%s3 + $0x350] sm:$0xff]
    %v642 = vld [vmem:[%s3 + $0x358] sm:$0xff]
    %v643 = vld [vmem:[%s3 + $0x360] sm:$0xff]
    %v644 = vld [vmem:[%s3 + $0x368] sm:$0xff]
    %v645 = vld [vmem:[%s3 + $0x370] sm:$0xff]
    %v646 = vld [vmem:[%s3 + $0x378] sm:$0xff]
    %v647 = vld [vmem:[%s3 + $0x380] sm:$0xff]
    %v648 = vld [vmem:[%s3 + $0x388] sm:$0xff]
    %v649 = vld [vmem:[%s3 + $0x390] sm:$0xff]
    %v650 = vld [vmem:[%s3 + $0x398] sm:$0xff]
    %v651 = vld [vmem:[%s3 + $0x3a0] sm:$0xff]
    %v652 = vld [vmem:[%s3 + $0x3a8] sm:$0xff]
    %v653 = vld [vmem:[%s3 + $0x3b0] sm:$0xff]
    %v654 = vld [vmem:[%s3 + $0x3b8] sm:$0xff]
    %v655 = vld [vmem:[%s3 + $0x3c0] sm:$0xff]
    %v656 = vld [vmem:[%s3 + $0x3c8] sm:$0xff]
    %v657 = vld [vmem:[%s3 + $0x3d0] sm:$0xff]
    %v658 = vld [vmem:[%s3 + $0x3d8] sm:$0xff]
    %v659 = vld [vmem:[%s3 + $0x3e0] sm:$0xff]
    %v660 = vld [vmem:[%s3 + $0x3e8] sm:$0xff]
    %v661 = vld [vmem:[%s3 + $0x3f0] sm:$0xff]
    %v662 = vld [vmem:[%s3 + $0x3f8] sm:$0xff]
    %v663 = vld [vmem:[%s4] sm:$0xf]
    %v665 = vlaneseq
    %v666 = vshrl.u32 %v665, 7
    %v667 = vsub.s32 0, %v666
    %v668 = vrot.slane %v663, %v667
    %v669 = vlaneseq
    %v670 = vshrl.u32 %v669, 7
    %v671 = vsub.s32 1, %v670
    %v672 = vrot.slane %v663, %v671
    %v673 = vlaneseq
    %v674 = vshrl.u32 %v673, 7
    %v675 = vsub.s32 2, %v674
    %v676 = vrot.slane %v663, %v675
    %v677 = vlaneseq
    %v678 = vshrl.u32 %v677, 7
    %v679 = vsub.s32 3, %v678
    %v680 = vrot.slane %v663, %v679
    %v813 = vunpack.c.l.b16 %v535
    %v814 = vunpack.c.h.b16 %v535
    %v815 = vunpack.c.l.b16 %v536
    %v816 = vunpack.c.h.b16 %v536
    %v817 = vunpack.c.l.b16 %v537
    %v818 = vunpack.c.h.b16 %v537
    %v819 = vunpack.c.l.b16 %v538
    %v820 = vunpack.c.h.b16 %v538
    %v821 = vunpack.c.l.b16 %v539
    %v822 = vunpack.c.h.b16 %v539
    %v823 = vunpack.c.l.b16 %v540
    %v824 = vunpack.c.h.b16 %v540
    %v825 = vunpack.c.l.b16 %v541
    %v826 = vunpack.c.h.b16 %v541
    %v827 = vunpack.c.l.b16 %v542
    %v828 = vunpack.c.h.b16 %v542
    %v829 = vunpack.c.l.b16 %v543
    %v830 = vunpack.c.h.b16 %v543
    %v831 = vunpack.c.l.b16 %v544
    %v832 = vunpack.c.h.b16 %v544
    %v833 = vunpack.c.l.b16 %v545
    %v834 = vunpack.c.h.b16 %v545
    %v835 = vunpack.c.l.b16 %v546
    %v836 = vunpack.c.h.b16 %v546
    %v837 = vunpack.c.l.b16 %v547
    %v838 = vunpack.c.h.b16 %v547
    %v839 = vunpack.c.l.b16 %v548
    %v840 = vunpack.c.h.b16 %v548
    %v841 = vunpack.c.l.b16 %v549
    %v842 = vunpack.c.h.b16 %v549
    %v843 = vunpack.c.l.b16 %v550
    %v844 = vunpack.c.h.b16 %v550
    %v845 = vunpack.c.l.b16 %v551
    %v846 = vunpack.c.h.b16 %v551
    %v847 = vunpack.c.l.b16 %v552
    %v848 = vunpack.c.h.b16 %v552
    %v849 = vunpack.c.l.b16 %v553
    %v850 = vunpack.c.h.b16 %v553
    %v851 = vunpack.c.l.b16 %v554
    %v852 = vunpack.c.h.b16 %v554
    %v853 = vunpack.c.l.b16 %v555
    %v854 = vunpack.c.h.b16 %v555
    %v855 = vunpack.c.l.b16 %v556
    %v856 = vunpack.c.h.b16 %v556
    %v857 = vunpack.c.l.b16 %v557
    %v858 = vunpack.c.h.b16 %v557
    %v859 = vunpack.c.l.b16 %v558
    %v860 = vunpack.c.h.b16 %v558
    %v861 = vunpack.c.l.b16 %v559
    %v862 = vunpack.c.h.b16 %v559
    %v863 = vunpack.c.l.b16 %v560
    %v864 = vunpack.c.h.b16 %v560
    %v865 = vunpack.c.l.b16 %v561
    %v866 = vunpack.c.h.b16 %v561
    %v867 = vunpack.c.l.b16 %v562
    %v868 = vunpack.c.h.b16 %v562
    %v869 = vunpack.c.l.b16 %v563
    %v870 = vunpack.c.h.b16 %v563
    %v871 = vunpack.c.l.b16 %v564
    %v872 = vunpack.c.h.b16 %v564
    %v873 = vunpack.c.l.b16 %v565
    %v874 = vunpack.c.h.b16 %v565
    %v875 = vunpack.c.l.b16 %v566
    %v876 = vunpack.c.h.b16 %v566
    %v877 = vunpack.c.l.b16 %v567
    %v878 = vunpack.c.h.b16 %v567
    %v879 = vunpack.c.l.b16 %v568
    %v880 = vunpack.c.h.b16 %v568
    %v881 = vunpack.c.l.b16 %v569
    %v882 = vunpack.c.h.b16 %v569
    %v883 = vunpack.c.l.b16 %v570
    %v884 = vunpack.c.h.b16 %v570
    %v885 = vunpack.c.l.b16 %v571
    %v886 = vunpack.c.h.b16 %v571
    %v887 = vunpack.c.l.b16 %v572
    %v888 = vunpack.c.h.b16 %v572
    %v889 = vunpack.c.l.b16 %v573
    %v890 = vunpack.c.h.b16 %v573
    %v891 = vunpack.c.l.b16 %v574
    %v892 = vunpack.c.h.b16 %v574
    %v893 = vunpack.c.l.b16 %v575
    %v894 = vunpack.c.h.b16 %v575
    %v895 = vunpack.c.l.b16 %v576
    %v896 = vunpack.c.h.b16 %v576
    %v897 = vunpack.c.l.b16 %v577
    %v898 = vunpack.c.h.b16 %v577
    %v899 = vunpack.c.l.b16 %v578
    %v900 = vunpack.c.h.b16 %v578
    %v901 = vunpack.c.l.b16 %v579
    %v902 = vunpack.c.h.b16 %v579
    %v903 = vunpack.c.l.b16 %v580
    %v904 = vunpack.c.h.b16 %v580
    %v905 = vunpack.c.l.b16 %v581
    %v906 = vunpack.c.h.b16 %v581
    %v907 = vunpack.c.l.b16 %v582
    %v908 = vunpack.c.h.b16 %v582
    %v909 = vunpack.c.l.b16 %v583
    %v910 = vunpack.c.h.b16 %v583
    %v911 = vunpack.c.l.b16 %v584
    %v912 = vunpack.c.h.b16 %v584
    %v913 = vunpack.c.l.b16 %v585
    %v914 = vunpack.c.h.b16 %v585
    %v915 = vunpack.c.l.b16 %v586
    %v916 = vunpack.c.h.b16 %v586
    %v917 = vunpack.c.l.b16 %v587
    %v918 = vunpack.c.h.b16 %v587
    %v919 = vunpack.c.l.b16 %v588
    %v920 = vunpack.c.h.b16 %v588
    %v921 = vunpack.c.l.b16 %v589
    %v922 = vunpack.c.h.b16 %v589
    %v923 = vunpack.c.l.b16 %v590
    %v924 = vunpack.c.h.b16 %v590
    %v925 = vunpack.c.l.b16 %v591
    %v926 = vunpack.c.h.b16 %v591
    %v927 = vunpack.c.l.b16 %v592
    %v928 = vunpack.c.h.b16 %v592
    %v929 = vunpack.c.l.b16 %v593
    %v930 = vunpack.c.h.b16 %v593
    %v931 = vunpack.c.l.b16 %v594
    %v932 = vunpack.c.h.b16 %v594
    %v933 = vunpack.c.l.b16 %v595
    %v934 = vunpack.c.h.b16 %v595
    %v935 = vunpack.c.l.b16 %v596
    %v936 = vunpack.c.h.b16 %v596
    %v937 = vunpack.c.l.b16 %v597
    %v938 = vunpack.c.h.b16 %v597
    %v939 = vunpack.c.l.b16 %v598
    %v940 = vunpack.c.h.b16 %v598
    %v941 = vunpack.c.l.b16 %v599
    %v942 = vunpack.c.h.b16 %v599
    %v943 = vunpack.c.l.b16 %v600
    %v944 = vunpack.c.h.b16 %v600
    %v945 = vunpack.c.l.b16 %v601
    %v946 = vunpack.c.h.b16 %v601
    %v947 = vunpack.c.l.b16 %v602
    %v948 = vunpack.c.h.b16 %v602
    %v949 = vunpack.c.l.b16 %v603
    %v950 = vunpack.c.h.b16 %v603
    %v951 = vunpack.c.l.b16 %v604
    %v952 = vunpack.c.h.b16 %v604
    %v953 = vunpack.c.l.b16 %v605
    %v954 = vunpack.c.h.b16 %v605
    %v955 = vunpack.c.l.b16 %v606
    %v956 = vunpack.c.h.b16 %v606
    %v957 = vunpack.c.l.b16 %v607
    %v958 = vunpack.c.h.b16 %v607
    %v959 = vunpack.c.l.b16 %v608
    %v960 = vunpack.c.h.b16 %v608
    %v961 = vunpack.c.l.b16 %v609
    %v962 = vunpack.c.h.b16 %v609
    %v963 = vunpack.c.l.b16 %v610
    %v964 = vunpack.c.h.b16 %v610
    %v965 = vunpack.c.l.b16 %v611
    %v966 = vunpack.c.h.b16 %v611
    %v967 = vunpack.c.l.b16 %v612
    %v968 = vunpack.c.h.b16 %v612
    %v969 = vunpack.c.l.b16 %v613
    %v970 = vunpack.c.h.b16 %v613
    %v971 = vunpack.c.l.b16 %v614
    %v972 = vunpack.c.h.b16 %v614
    %v973 = vunpack.c.l.b16 %v615
    %v974 = vunpack.c.h.b16 %v615
    %v975 = vunpack.c.l.b16 %v616
    %v976 = vunpack.c.h.b16 %v616
    %v977 = vunpack.c.l.b16 %v617
    %v978 = vunpack.c.h.b16 %v617
    %v979 = vunpack.c.l.b16 %v618
    %v980 = vunpack.c.h.b16 %v618
    %v981 = vunpack.c.l.b16 %v619
    %v982 = vunpack.c.h.b16 %v619
    %v983 = vunpack.c.l.b16 %v620
    %v984 = vunpack.c.h.b16 %v620
    %v985 = vunpack.c.l.b16 %v621
    %v986 = vunpack.c.h.b16 %v621
    %v987 = vunpack.c.l.b16 %v622
    %v988 = vunpack.c.h.b16 %v622
    %v989 = vunpack.c.l.b16 %v623
    %v990 = vunpack.c.h.b16 %v623
    %v991 = vunpack.c.l.b16 %v624
    %v992 = vunpack.c.h.b16 %v624
    %v993 = vunpack.c.l.b16 %v625
    %v994 = vunpack.c.h.b16 %v625
    %v995 = vunpack.c.l.b16 %v626
    %v996 = vunpack.c.h.b16 %v626
    %v997 = vunpack.c.l.b16 %v627
    %v998 = vunpack.c.h.b16 %v627
    %v999 = vunpack.c.l.b16 %v628
    %v1000 = vunpack.c.h.b16 %v628
    %v1001 = vunpack.c.l.b16 %v629
    %v1002 = vunpack.c.h.b16 %v629
    %v1003 = vunpack.c.l.b16 %v630
    %v1004 = vunpack.c.h.b16 %v630
    %v1005 = vunpack.c.l.b16 %v631
    %v1006 = vunpack.c.h.b16 %v631
    %v1007 = vunpack.c.l.b16 %v632
    %v1008 = vunpack.c.h.b16 %v632
    %v1009 = vunpack.c.l.b16 %v633
    %v1010 = vunpack.c.h.b16 %v633
    %v1011 = vunpack.c.l.b16 %v634
    %v1012 = vunpack.c.h.b16 %v634
    %v1013 = vunpack.c.l.b16 %v635
    %v1014 = vunpack.c.h.b16 %v635
    %v1015 = vunpack.c.l.b16 %v636
    %v1016 = vunpack.c.h.b16 %v636
    %v1017 = vunpack.c.l.b16 %v637
    %v1018 = vunpack.c.h.b16 %v637
    %v1019 = vunpack.c.l.b16 %v638
    %v1020 = vunpack.c.h.b16 %v638
    %v1021 = vunpack.c.l.b16 %v639
    %v1022 = vunpack.c.h.b16 %v639
    %v1023 = vunpack.c.l.b16 %v640
    %v1024 = vunpack.c.h.b16 %v640
    %v1025 = vunpack.c.l.b16 %v641
    %v1026 = vunpack.c.h.b16 %v641
    %v1027 = vunpack.c.l.b16 %v642
    %v1028 = vunpack.c.h.b16 %v642
    %v1029 = vunpack.c.l.b16 %v643
    %v1030 = vunpack.c.h.b16 %v643
    %v1031 = vunpack.c.l.b16 %v644
    %v1032 = vunpack.c.h.b16 %v644
    %v1033 = vunpack.c.l.b16 %v645
    %v1034 = vunpack.c.h.b16 %v645
    %v1035 = vunpack.c.l.b16 %v646
    %v1036 = vunpack.c.h.b16 %v646
    %v1037 = vunpack.c.l.b16 %v647
    %v1038 = vunpack.c.h.b16 %v647
    %v1039 = vunpack.c.l.b16 %v648
    %v1040 = vunpack.c.h.b16 %v648
    %v1041 = vunpack.c.l.b16 %v649
    %v1042 = vunpack.c.h.b16 %v649
    %v1043 = vunpack.c.l.b16 %v650
    %v1044 = vunpack.c.h.b16 %v650
    %v1045 = vunpack.c.l.b16 %v651
    %v1046 = vunpack.c.h.b16 %v651
    %v1047 = vunpack.c.l.b16 %v652
    %v1048 = vunpack.c.h.b16 %v652
    %v1049 = vunpack.c.l.b16 %v653
    %v1050 = vunpack.c.h.b16 %v653
    %v1051 = vunpack.c.l.b16 %v654
    %v1052 = vunpack.c.h.b16 %v654
    %v1053 = vunpack.c.l.b16 %v655
    %v1054 = vunpack.c.h.b16 %v655
    %v1055 = vunpack.c.l.b16 %v656
    %v1056 = vunpack.c.h.b16 %v656
    %v1057 = vunpack.c.l.b16 %v657
    %v1058 = vunpack.c.h.b16 %v657
    %v1059 = vunpack.c.l.b16 %v658
    %v1060 = vunpack.c.h.b16 %v658
    %v1061 = vunpack.c.l.b16 %v659
    %v1062 = vunpack.c.h.b16 %v659
    %v1063 = vunpack.c.l.b16 %v660
    %v1064 = vunpack.c.h.b16 %v660
    %v1065 = vunpack.c.l.b16 %v661
    %v1066 = vunpack.c.h.b16 %v661
    %v1067 = vunpack.c.l.b16 %v662
    %v1068 = vunpack.c.h.b16 %v662
    %v1069 = vpack.c.b16 %v817, %v813
    %v1070 = vpack.c.b16 %v818, %v814
    %v1071 = vpack.c.b16 %v819, %v815
    %v1072 = vpack.c.b16 %v820, %v816
    %v1073 = vpack.c.b16 %v825, %v821
    %v1074 = vpack.c.b16 %v826, %v822
    %v1075 = vpack.c.b16 %v827, %v823
    %v1076 = vpack.c.b16 %v828, %v824
    %v1077 = vpack.c.b16 %v833, %v829
    %v1078 = vpack.c.b16 %v834, %v830
    %v1079 = vpack.c.b16 %v835, %v831
    %v1080 = vpack.c.b16 %v836, %v832
    %v1081 = vpack.c.b16 %v841, %v837
    %v1082 = vpack.c.b16 %v842, %v838
    %v1083 = vpack.c.b16 %v843, %v839
    %v1084 = vpack.c.b16 %v844, %v840
    %v1085 = vpack.c.b16 %v849, %v845
    %v1086 = vpack.c.b16 %v850, %v846
    %v1087 = vpack.c.b16 %v851, %v847
    %v1088 = vpack.c.b16 %v852, %v848
    %v1089 = vpack.c.b16 %v857, %v853
    %v1090 = vpack.c.b16 %v858, %v854
    %v1091 = vpack.c.b16 %v859, %v855
    %v1092 = vpack.c.b16 %v860, %v856
    %v1093 = vpack.c.b16 %v865, %v861
    %v1094 = vpack.c.b16 %v866, %v862
    %v1095 = vpack.c.b16 %v867, %v863
    %v1096 = vpack.c.b16 %v868, %v864
    %v1097 = vpack.c.b16 %v873, %v869
    %v1098 = vpack.c.b16 %v874, %v870
    %v1099 = vpack.c.b16 %v875, %v871
    %v1100 = vpack.c.b16 %v876, %v872
    %v1101 = vpack.c.b16 %v881, %v877
    %v1102 = vpack.c.b16 %v882, %v878
    %v1103 = vpack.c.b16 %v883, %v879
    %v1104 = vpack.c.b16 %v884, %v880
    %v1105 = vpack.c.b16 %v889, %v885
    %v1106 = vpack.c.b16 %v890, %v886
    %v1107 = vpack.c.b16 %v891, %v887
    %v1108 = vpack.c.b16 %v892, %v888
    %v1109 = vpack.c.b16 %v897, %v893
    %v1110 = vpack.c.b16 %v898, %v894
    %v1111 = vpack.c.b16 %v899, %v895
    %v1112 = vpack.c.b16 %v900, %v896
    %v1113 = vpack.c.b16 %v905, %v901
    %v1114 = vpack.c.b16 %v906, %v902
    %v1115 = vpack.c.b16 %v907, %v903
    %v1116 = vpack.c.b16 %v908, %v904
    %v1117 = vpack.c.b16 %v913, %v909
    %v1118 = vpack.c.b16 %v914, %v910
    %v1119 = vpack.c.b16 %v915, %v911
    %v1120 = vpack.c.b16 %v916, %v912
    %v1121 = vpack.c.b16 %v921, %v917
    %v1122 = vpack.c.b16 %v922, %v918
    %v1123 = vpack.c.b16 %v923, %v919
    %v1124 = vpack.c.b16 %v924, %v920
    %v1125 = vpack.c.b16 %v929, %v925
    %v1126 = vpack.c.b16 %v930, %v926
    %v1127 = vpack.c.b16 %v931, %v927
    %v1128 = vpack.c.b16 %v932, %v928
    %v1129 = vpack.c.b16 %v937, %v933
    %v1130 = vpack.c.b16 %v938, %v934
    %v1131 = vpack.c.b16 %v939, %v935
    %v1132 = vpack.c.b16 %v940, %v936
    %v1133 = vpack.c.b16 %v945, %v941
    %v1134 = vpack.c.b16 %v946, %v942
    %v1135 = vpack.c.b16 %v947, %v943
    %v1136 = vpack.c.b16 %v948, %v944
    %v1137 = vpack.c.b16 %v953, %v949
    %v1138 = vpack.c.b16 %v954, %v950
    %v1139 = vpack.c.b16 %v955, %v951
    %v1140 = vpack.c.b16 %v956, %v952
    %v1141 = vpack.c.b16 %v961, %v957
    %v1142 = vpack.c.b16 %v962, %v958
    %v1143 = vpack.c.b16 %v963, %v959
    %v1144 = vpack.c.b16 %v964, %v960
    %v1145 = vpack.c.b16 %v969, %v965
    %v1146 = vpack.c.b16 %v970, %v966
    %v1147 = vpack.c.b16 %v971, %v967
    %v1148 = vpack.c.b16 %v972, %v968
    %v1149 = vpack.c.b16 %v977, %v973
    %v1150 = vpack.c.b16 %v978, %v974
    %v1151 = vpack.c.b16 %v979, %v975
    %v1152 = vpack.c.b16 %v980, %v976
    %v1153 = vpack.c.b16 %v985, %v981
    %v1154 = vpack.c.b16 %v986, %v982
    %v1155 = vpack.c.b16 %v987, %v983
    %v1156 = vpack.c.b16 %v988, %v984
    %v1157 = vpack.c.b16 %v993, %v989
    %v1158 = vpack.c.b16 %v994, %v990
    %v1159 = vpack.c.b16 %v995, %v991
    %v1160 = vpack.c.b16 %v996, %v992
    %v1161 = vpack.c.b16 %v1001, %v997
    %v1162 = vpack.c.b16 %v1002, %v998
    %v1163 = vpack.c.b16 %v1003, %v999
    %v1164 = vpack.c.b16 %v1004, %v1000
    %v1165 = vpack.c.b16 %v1009, %v1005
    %v1166 = vpack.c.b16 %v1010, %v1006
    %v1167 = vpack.c.b16 %v1011, %v1007
    %v1168 = vpack.c.b16 %v1012, %v1008
    %v1169 = vpack.c.b16 %v1017, %v1013
    %v1170 = vpack.c.b16 %v1018, %v1014
    %v1171 = vpack.c.b16 %v1019, %v1015
    %v1172 = vpack.c.b16 %v1020, %v1016
    %v1173 = vpack.c.b16 %v1025, %v1021
    %v1174 = vpack.c.b16 %v1026, %v1022
    %v1175 = vpack.c.b16 %v1027, %v1023
    %v1176 = vpack.c.b16 %v1028, %v1024
    %v1177 = vpack.c.b16 %v1033, %v1029
    %v1178 = vpack.c.b16 %v1034, %v1030
    %v1179 = vpack.c.b16 %v1035, %v1031
    %v1180 = vpack.c.b16 %v1036, %v1032
    %v1181 = vpack.c.b16 %v1041, %v1037
    %v1182 = vpack.c.b16 %v1042, %v1038
    %v1183 = vpack.c.b16 %v1043, %v1039
    %v1184 = vpack.c.b16 %v1044, %v1040
    %v1185 = vpack.c.b16 %v1049, %v1045
    %v1186 = vpack.c.b16 %v1050, %v1046
    %v1187 = vpack.c.b16 %v1051, %v1047
    %v1188 = vpack.c.b16 %v1052, %v1048
    %v1189 = vpack.c.b16 %v1057, %v1053
    %v1190 = vpack.c.b16 %v1058, %v1054
    %v1191 = vpack.c.b16 %v1059, %v1055
    %v1192 = vpack.c.b16 %v1060, %v1056
    %v1193 = vpack.c.b16 %v1065, %v1061
    %v1194 = vpack.c.b16 %v1066, %v1062
    %v1195 = vpack.c.b16 %v1067, %v1063
    %v1196 = vpack.c.b16 %v1068, %v1064
    %1325 = vmatprep.subr.bf16.mxu0 %v1070
    %1326 = vmatpush1.bf16.msra.mxu0 %v1069
    %1327 = vmatprep.subr.bf16.mxu0 %v1074
    %1328 = vmatpush1.bf16.msra.mxu0 %v1073
    %1329 = vmatprep.subr.bf16.mxu0 %v1078
    %1330 = vmatpush1.bf16.msra.mxu0 %v1077
    %1331 = vmatprep.subr.bf16.mxu0 %v1082
    %1332 = vmatpush1.bf16.msra.mxu0 %v1081
    %1333 = vmatprep.subr.bf16.mxu0 %v1086
    %1334 = vmatpush1.bf16.msra.mxu0 %v1085
    %1335 = vmatprep.subr.bf16.mxu0 %v1090
    %1336 = vmatpush1.bf16.msra.mxu0 %v1089
    %1337 = vmatprep.subr.bf16.mxu0 %v1094
    %1338 = vmatpush1.bf16.msra.mxu0 %v1093
    %1339 = vmatprep.subr.bf16.mxu0 %v1098
    %1340 = vmatpush1.bf16.msra.mxu0 %v1097
    %1341 = vmatprep.subr.bf16.mxu0 %v1102
    %1342 = vmatpush1.bf16.msra.mxu0 %v1101
    %1343 = vmatprep.subr.bf16.mxu0 %v1106
    %1344 = vmatpush1.bf16.msra.mxu0 %v1105
    %1345 = vmatprep.subr.bf16.mxu0 %v1110
    %1346 = vmatpush1.bf16.msra.mxu0 %v1109
    %1347 = vmatprep.subr.bf16.mxu0 %v1114
    %1348 = vmatpush1.bf16.msra.mxu0 %v1113
    %1349 = vmatprep.subr.bf16.mxu0 %v1118
    %1350 = vmatpush1.bf16.msra.mxu0 %v1117
    %1351 = vmatprep.subr.bf16.mxu0 %v1122
    %1352 = vmatpush1.bf16.msra.mxu0 %v1121
    %1353 = vmatprep.subr.bf16.mxu0 %v1126
    %1354 = vmatpush1.bf16.msra.mxu0 %v1125
    %1355 = vmatprep.subr.bf16.mxu0 %v1130
    %1356 = vmatpush1.bf16.msra.mxu0 %v1129
    %1357 = vmatprep.mubr.bf16.mxu0 %v532
    %1358 = vmatmul.mubr.bf16.gmra.mrb[0].mxu0 %v531
    %v1359 = vpop.f32.mrb[0].mxu0
    %v1360 = vadd.f32 %v668, %v1359
    %v1361 = vpop.f32.mrb[0].mxu0
    %v1362 = vadd.f32 %v672, %v1361
    %v1363 = vpop.f32.mrb[0].mxu0
    %v1364 = vpop.f32.mrb[0].mxu0
    %1365 = vdwg.mxu0
    %1366 = vmatprep.subr.bf16.mxu0 %v1134
    %1367 = vmatpush1.bf16.msra.mxu0 %v1133
    %1368 = vmatprep.subr.bf16.mxu0 %v1138
    %1369 = vmatpush1.bf16.msra.mxu0 %v1137
    %1370 = vmatprep.subr.bf16.mxu0 %v1142
    %1371 = vmatpush1.bf16.msra.mxu0 %v1141
    %1372 = vmatprep.subr.bf16.mxu0 %v1146
    %1373 = vmatpush1.bf16.msra.mxu0 %v1145
    %1374 = vmatprep.subr.bf16.mxu0 %v1150
    %1375 = vmatpush1.bf16.msra.mxu0 %v1149
    %1376 = vmatprep.subr.bf16.mxu0 %v1154
    %1377 = vmatpush1.bf16.msra.mxu0 %v1153
    %1378 = vmatprep.subr.bf16.mxu0 %v1158
    %1379 = vmatpush1.bf16.msra.mxu0 %v1157
    %1380 = vmatprep.subr.bf16.mxu0 %v1162
    %1381 = vmatpush1.bf16.msra.mxu0 %v1161
    %1382 = vmatprep.subr.bf16.mxu0 %v1166
    %1383 = vmatpush1.bf16.msra.mxu0 %v1165
    %1384 = vmatprep.subr.bf16.mxu0 %v1170
    %1385 = vmatpush1.bf16.msra.mxu0 %v1169
    %1386 = vmatprep.subr.bf16.mxu0 %v1174
    %1387 = vmatpush1.bf16.msra.mxu0 %v1173
    %1388 = vmatprep.subr.bf16.mxu0 %v1178
    %1389 = vmatpush1.bf16.msra.mxu0 %v1177
    %1390 = vmatprep.subr.bf16.mxu0 %v1182
    %1391 = vmatpush1.bf16.msra.mxu0 %v1181
    %1392 = vmatprep.subr.bf16.mxu0 %v1186
    %1393 = vmatpush1.bf16.msra.mxu0 %v1185
    %1394 = vmatprep.subr.bf16.mxu0 %v1190
    %1395 = vmatpush1.bf16.msra.mxu0 %v1189
    %1396 = vmatprep.subr.bf16.mxu0 %v1194
    %1397 = vmatpush1.bf16.msra.mxu0 %v1193
    %1398 = vmatprep.mubr.bf16.mxu0 %v534
    %1399 = vmatmul.mubr.bf16.gmra.mrb[0].mxu0 %v533
    %v1400 = vpop.f32.mrb[0].mxu0
    %v1401 = vadd.f32 %v1360, %v1400
    %v1402 = vpop.f32.mrb[0].mxu0
    %v1403 = vadd.f32 %v1362, %v1402
    %v1404 = vpop.f32.mrb[0].mxu0
    %v1405 = vpop.f32.mrb[0].mxu0
    %1406 = vdwg.mxu0
    %1407 = vmatprep.subr.bf16.mxu0 %v1072
    %1408 = vmatpush1.bf16.msra.mxu0 %v1071
    %1409 = vmatprep.subr.bf16.mxu0 %v1076
    %1410 = vmatpush1.bf16.msra.mxu0 %v1075
    %1411 = vmatprep.subr.bf16.mxu0 %v1080
    %1412 = vmatpush1.bf16.msra.mxu0 %v1079
    %1413 = vmatprep.subr.bf16.mxu0 %v1084
    %1414 = vmatpush1.bf16.msra.mxu0 %v1083
    %1415 = vmatprep.subr.bf16.mxu0 %v1088
    %1416 = vmatpush1.bf16.msra.mxu0 %v1087
    %1417 = vmatprep.subr.bf16.mxu0 %v1092
    %1418 = vmatpush1.bf16.msra.mxu0 %v1091
    %1419 = vmatprep.subr.bf16.mxu0 %v1096
    %1420 = vmatpush1.bf16.msra.mxu0 %v1095
    %1421 = vmatprep.subr.bf16.mxu0 %v1100
    %1422 = vmatpush1.bf16.msra.mxu0 %v1099
    %1423 = vmatprep.subr.bf16.mxu0 %v1104
    %1424 = vmatpush1.bf16.msra.mxu0 %v1103
    %1425 = vmatprep.subr.bf16.mxu0 %v1108
    %1426 = vmatpush1.bf16.msra.mxu0 %v1107
    %1427 = vmatprep.subr.bf16.mxu0 %v1112
    %1428 = vmatpush1.bf16.msra.mxu0 %v1111
    %1429 = vmatprep.subr.bf16.mxu0 %v1116
    %1430 = vmatpush1.bf16.msra.mxu0 %v1115
    %1431 = vmatprep.subr.bf16.mxu0 %v1120
    %1432 = vmatpush1.bf16.msra.mxu0 %v1119
    %1433 = vmatprep.subr.bf16.mxu0 %v1124
    %1434 = vmatpush1.bf16.msra.mxu0 %v1123
    %1435 = vmatprep.subr.bf16.mxu0 %v1128
    %1436 = vmatpush1.bf16.msra.mxu0 %v1127
    %1437 = vmatprep.subr.bf16.mxu0 %v1132
    %1438 = vmatpush1.bf16.msra.mxu0 %v1131
    %1439 = vmatprep.mubr.bf16.mxu0 %v532
    %1440 = vmatmul.mubr.bf16.gmra.mrb[0].mxu0 %v531
    %v1441 = vpop.f32.mrb[0].mxu0
    %v1442 = vadd.f32 %v676, %v1441
    %v1443 = vpop.f32.mrb[0].mxu0
    %v1444 = vadd.f32 %v680, %v1443
    %v1445 = vpop.f32.mrb[0].mxu0
    %v1446 = vpop.f32.mrb[0].mxu0
    %1447 = vdwg.mxu0
    %1448 = vmatprep.subr.bf16.mxu0 %v1136
    %1449 = vmatpush1.bf16.msra.mxu0 %v1135
    %1450 = vmatprep.subr.bf16.mxu0 %v1140
    %1451 = vmatpush1.bf16.msra.mxu0 %v1139
    %1452 = vmatprep.subr.bf16.mxu0 %v1144
    %1453 = vmatpush1.bf16.msra.mxu0 %v1143
    %1454 = vmatprep.subr.bf16.mxu0 %v1148
    %1455 = vmatpush1.bf16.msra.mxu0 %v1147
    %1456 = vmatprep.subr.bf16.mxu0 %v1152
    %1457 = vmatpush1.bf16.msra.mxu0 %v1151
    %1458 = vmatprep.subr.bf16.mxu0 %v1156
    %1459 = vmatpush1.bf16.msra.mxu0 %v1155
    %1460 = vmatprep.subr.bf16.mxu0 %v1160
    %1461 = vmatpush1.bf16.msra.mxu0 %v1159
    %1462 = vmatprep.subr.bf16.mxu0 %v1164
    %1463 = vmatpush1.bf16.msra.mxu0 %v1163
    %1464 = vmatprep.subr.bf16.mxu0 %v1168
    %1465 = vmatpush1.bf16.msra.mxu0 %v1167
    %1466 = vmatprep.subr.bf16.mxu0 %v1172
    %1467 = vmatpush1.bf16.msra.mxu0 %v1171
    %1468 = vmatprep.subr.bf16.mxu0 %v1176
    %1469 = vmatpush1.bf16.msra.mxu0 %v1175
    %1470 = vmatprep.subr.bf16.mxu0 %v1180
    %1471 = vmatpush1.bf16.msra.mxu0 %v1179
    %1472 = vmatprep.subr.bf16.mxu0 %v1184
    %1473 = vmatpush1.bf16.msra.mxu0 %v1183
    %1474 = vmatprep.subr.bf16.mxu0 %v1188
    %1475 = vmatpush1.bf16.msra.mxu0 %v1187
    %1476 = vmatprep.subr.bf16.mxu0 %v1192
    %1477 = vmatpush1.bf16.msra.mxu0 %v1191
    %1478 = vmatprep.subr.bf16.mxu0 %v1196
    %1479 = vmatpush1.bf16.msra.mxu0 %v1195
    %1480 = vmatprep.mubr.bf16.mxu0 %v534
    %1481 = vmatmul.mubr.bf16.gmra.mrb[0].mxu0 %v533
    %v1482 = vpop.f32.mrb[0].mxu0
    %v1483 = vadd.f32 %v1442, %v1482
    %v1484 = vpop.f32.mrb[0].mxu0
    %v1485 = vadd.f32 %v1444, %v1484
    %v1486 = vpop.f32.mrb[0].mxu0
    %v1487 = vpop.f32.mrb[0].mxu0
    %1488 = vdwg.mxu0
    %vm1489 = vcmp.gt.f32.partialorder %v1401, 0.0
    %vm1490 = vcmp.gt.f32.partialorder %v1403, 0.0
    %vm1491 = vcmp.gt.f32.partialorder %v1483, 0.0
    %vm1492 = vcmp.gt.f32.partialorder %v1485, 0.0
    %v1493 = vmul.f32 %v1401, 0.2
    %v1494 = vmul.f32 %v1403, 0.2
    %v1495 = vmul.f32 %v1483, 0.2
    %v1496 = vmul.f32 %v1485, 0.2
    %v1497 = vsel %vm1489, %v1401, %v1493
    %v1498 = vsel %vm1490, %v1403, %v1494
    %v1499 = vsel %vm1491, %v1483, %v1495
    %v1500 = vsel %vm1492, %v1485, %v1496
    %v1501 = vpack.c.bf16 %v1497, %v1497
    %v1502 = vpack.c.bf16 %v1498, %v1498
    %v1503 = vpack.c.bf16 %v1499, %v1499
    %v1504 = vpack.c.bf16 %v1500, %v1500
    %v1505 = vld [vmem:[%s5] sm:$0xff]
    %v1506 = vld [vmem:[%s5 + $0x8] sm:$0xff]
    %v1507 = vld [vmem:[%s5 + $0x10] sm:$0xff]
    %v1508 = vld [vmem:[%s5 + $0x18] sm:$0xff]
    %v1509 = vld [vmem:[%s5 + $0x20] sm:$0xff]
    %v1510 = vld [vmem:[%s5 + $0x28] sm:$0xff]
    %v1511 = vld [vmem:[%s5 + $0x30] sm:$0xff]
    %v1512 = vld [vmem:[%s5 + $0x38] sm:$0xff]
    %v1513 = vld [vmem:[%s5 + $0x40] sm:$0xff]
    %v1514 = vld [vmem:[%s5 + $0x48] sm:$0xff]
    %v1515 = vld [vmem:[%s5 + $0x50] sm:$0xff]
    %v1516 = vld [vmem:[%s5 + $0x58] sm:$0xff]
    %v1517 = vld [vmem:[%s5 + $0x60] sm:$0xff]
    %v1518 = vld [vmem:[%s5 + $0x68] sm:$0xff]
    %v1519 = vld [vmem:[%s5 + $0x70] sm:$0xff]
    %v1520 = vld [vmem:[%s5 + $0x78] sm:$0xff]
    %v1521 = vld [vmem:[%s5 + $0x80] sm:$0xff]
    %v1522 = vld [vmem:[%s5 + $0x88] sm:$0xff]
    %v1523 = vld [vmem:[%s5 + $0x90] sm:$0xff]
    %v1524 = vld [vmem:[%s5 + $0x98] sm:$0xff]
    %v1525 = vld [vmem:[%s5 + $0xa0] sm:$0xff]
    %v1526 = vld [vmem:[%s5 + $0xa8] sm:$0xff]
    %v1527 = vld [vmem:[%s5 + $0xb0] sm:$0xff]
    %v1528 = vld [vmem:[%s5 + $0xb8] sm:$0xff]
    %v1529 = vld [vmem:[%s5 + $0xc0] sm:$0xff]
    %v1530 = vld [vmem:[%s5 + $0xc8] sm:$0xff]
    %v1531 = vld [vmem:[%s5 + $0xd0] sm:$0xff]
    %v1532 = vld [vmem:[%s5 + $0xd8] sm:$0xff]
    %v1533 = vld [vmem:[%s5 + $0xe0] sm:$0xff]
    %v1534 = vld [vmem:[%s5 + $0xe8] sm:$0xff]
    %v1535 = vld [vmem:[%s5 + $0xf0] sm:$0xff]
    %v1536 = vld [vmem:[%s5 + $0xf8] sm:$0xff]
    %v1537 = vld [vmem:[%s5 + $0x100] sm:$0xff]
    %v1538 = vld [vmem:[%s5 + $0x108] sm:$0xff]
    %v1539 = vld [vmem:[%s5 + $0x110] sm:$0xff]
    %v1540 = vld [vmem:[%s5 + $0x118] sm:$0xff]
    %v1541 = vld [vmem:[%s5 + $0x120] sm:$0xff]
    %v1542 = vld [vmem:[%s5 + $0x128] sm:$0xff]
    %v1543 = vld [vmem:[%s5 + $0x130] sm:$0xff]
    %v1544 = vld [vmem:[%s5 + $0x138] sm:$0xff]
    %v1545 = vld [vmem:[%s5 + $0x140] sm:$0xff]
    %v1546 = vld [vmem:[%s5 + $0x148] sm:$0xff]
    %v1547 = vld [vmem:[%s5 + $0x150] sm:$0xff]
    %v1548 = vld [vmem:[%s5 + $0x158] sm:$0xff]
    %v1549 = vld [vmem:[%s5 + $0x160] sm:$0xff]
    %v1550 = vld [vmem:[%s5 + $0x168] sm:$0xff]
    %v1551 = vld [vmem:[%s5 + $0x170] sm:$0xff]
    %v1552 = vld [vmem:[%s5 + $0x178] sm:$0xff]
    %v1553 = vld [vmem:[%s5 + $0x180] sm:$0xff]
    %v1554 = vld [vmem:[%s5 + $0x188] sm:$0xff]
    %v1555 = vld [vmem:[%s5 + $0x190] sm:$0xff]
    %v1556 = vld [vmem:[%s5 + $0x198] sm:$0xff]
    %v1557 = vld [vmem:[%s5 + $0x1a0] sm:$0xff]
    %v1558 = vld [vmem:[%s5 + $0x1a8] sm:$0xff]
    %v1559 = vld [vmem:[%s5 + $0x1b0] sm:$0xff]
    %v1560 = vld [vmem:[%s5 + $0x1b8] sm:$0xff]
    %v1561 = vld [vmem:[%s5 + $0x1c0] sm:$0xff]
    %v1562 = vld [vmem:[%s5 + $0x1c8] sm:$0xff]
    %v1563 = vld [vmem:[%s5 + $0x1d0] sm:$0xff]
    %v1564 = vld [vmem:[%s5 + $0x1d8] sm:$0xff]
    %v1565 = vld [vmem:[%s5 + $0x1e0] sm:$0xff]
    %v1566 = vld [vmem:[%s5 + $0x1e8] sm:$0xff]
    %v1567 = vld [vmem:[%s5 + $0x1f0] sm:$0xff]
    %v1568 = vld [vmem:[%s5 + $0x1f8] sm:$0xff]
    %v1569 = vld [vmem:[%s5 + $0x200] sm:$0xff]
    %v1570 = vld [vmem:[%s5 + $0x208] sm:$0xff]
    %v1571 = vld [vmem:[%s5 + $0x210] sm:$0xff]
    %v1572 = vld [vmem:[%s5 + $0x218] sm:$0xff]
    %v1573 = vld [vmem:[%s5 + $0x220] sm:$0xff]
    %v1574 = vld [vmem:[%s5 + $0x228] sm:$0xff]
    %v1575 = vld [vmem:[%s5 + $0x230] sm:$0xff]
    %v1576 = vld [vmem:[%s5 + $0x238] sm:$0xff]
    %v1577 = vld [vmem:[%s5 + $0x240] sm:$0xff]
    %v1578 = vld [vmem:[%s5 + $0x248] sm:$0xff]
    %v1579 = vld [vmem:[%s5 + $0x250] sm:$0xff]
    %v1580 = vld [vmem:[%s5 + $0x258] sm:$0xff]
    %v1581 = vld [vmem:[%s5 + $0x260] sm:$0xff]
    %v1582 = vld [vmem:[%s5 + $0x268] sm:$0xff]
    %v1583 = vld [vmem:[%s5 + $0x270] sm:$0xff]
    %v1584 = vld [vmem:[%s5 + $0x278] sm:$0xff]
    %v1585 = vld [vmem:[%s5 + $0x280] sm:$0xff]
    %v1586 = vld [vmem:[%s5 + $0x288] sm:$0xff]
    %v1587 = vld [vmem:[%s5 + $0x290] sm:$0xff]
    %v1588 = vld [vmem:[%s5 + $0x298] sm:$0xff]
    %v1589 = vld [vmem:[%s5 + $0x2a0] sm:$0xff]
    %v1590 = vld [vmem:[%s5 + $0x2a8] sm:$0xff]
    %v1591 = vld [vmem:[%s5 + $0x2b0] sm:$0xff]
    %v1592 = vld [vmem:[%s5 + $0x2b8] sm:$0xff]
    %v1593 = vld [vmem:[%s5 + $0x2c0] sm:$0xff]
    %v1594 = vld [vmem:[%s5 + $0x2c8] sm:$0xff]
    %v1595 = vld [vmem:[%s5 + $0x2d0] sm:$0xff]
    %v1596 = vld [vmem:[%s5 + $0x2d8] sm:$0xff]
    %v1597 = vld [vmem:[%s5 + $0x2e0] sm:$0xff]
    %v1598 = vld [vmem:[%s5 + $0x2e8] sm:$0xff]
    %v1599 = vld [vmem:[%s5 + $0x2f0] sm:$0xff]
    %v1600 = vld [vmem:[%s5 + $0x2f8] sm:$0xff]
    %v1601 = vld [vmem:[%s5 + $0x300] sm:$0xff]
    %v1602 = vld [vmem:[%s5 + $0x308] sm:$0xff]
    %v1603 = vld [vmem:[%s5 + $0x310] sm:$0xff]
    %v1604 = vld [vmem:[%s5 + $0x318] sm:$0xff]
    %v1605 = vld [vmem:[%s5 + $0x320] sm:$0xff]
    %v1606 = vld [vmem:[%s5 + $0x328] sm:$0xff]
    %v1607 = vld [vmem:[%s5 + $0x330] sm:$0xff]
    %v1608 = vld [vmem:[%s5 + $0x338] sm:$0xff]
    %v1609 = vld [vmem:[%s5 + $0x340] sm:$0xff]
    %v1610 = vld [vmem:[%s5 + $0x348] sm:$0xff]
    %v1611 = vld [vmem:[%s5 + $0x350] sm:$0xff]
    %v1612 = vld [vmem:[%s5 + $0x358] sm:$0xff]
    %v1613 = vld [vmem:[%s5 + $0x360] sm:$0xff]
    %v1614 = vld [vmem:[%s5 + $0x368] sm:$0xff]
    %v1615 = vld [vmem:[%s5 + $0x370] sm:$0xff]
    %v1616 = vld [vmem:[%s5 + $0x378] sm:$0xff]
    %v1617 = vld [vmem:[%s5 + $0x380] sm:$0xff]
    %v1618 = vld [vmem:[%s5 + $0x388] sm:$0xff]
    %v1619 = vld [vmem:[%s5 + $0x390] sm:$0xff]
    %v1620 = vld [vmem:[%s5 + $0x398] sm:$0xff]
    %v1621 = vld [vmem:[%s5 + $0x3a0] sm:$0xff]
    %v1622 = vld [vmem:[%s5 + $0x3a8] sm:$0xff]
    %v1623 = vld [vmem:[%s5 + $0x3b0] sm:$0xff]
    %v1624 = vld [vmem:[%s5 + $0x3b8] sm:$0xff]
    %v1625 = vld [vmem:[%s5 + $0x3c0] sm:$0xff]
    %v1626 = vld [vmem:[%s5 + $0x3c8] sm:$0xff]
    %v1627 = vld [vmem:[%s5 + $0x3d0] sm:$0xff]
    %v1628 = vld [vmem:[%s5 + $0x3d8] sm:$0xff]
    %v1629 = vld [vmem:[%s5 + $0x3e0] sm:$0xff]
    %v1630 = vld [vmem:[%s5 + $0x3e8] sm:$0xff]
    %v1631 = vld [vmem:[%s5 + $0x3f0] sm:$0xff]
    %v1632 = vld [vmem:[%s5 + $0x3f8] sm:$0xff]
    %v1633 = vld [vmem:[%s6] sm:$0xf]
    %v1635 = vlaneseq
    %v1636 = vshrl.u32 %v1635, 7
    %v1637 = vsub.s32 0, %v1636
    %v1638 = vrot.slane %v1633, %v1637
    %v1639 = vlaneseq
    %v1640 = vshrl.u32 %v1639, 7
    %v1641 = vsub.s32 1, %v1640
    %v1642 = vrot.slane %v1633, %v1641
    %v1643 = vlaneseq
    %v1644 = vshrl.u32 %v1643, 7
    %v1645 = vsub.s32 2, %v1644
    %v1646 = vrot.slane %v1633, %v1645
    %v1647 = vlaneseq
    %v1648 = vshrl.u32 %v1647, 7
    %v1649 = vsub.s32 3, %v1648
    %v1650 = vrot.slane %v1633, %v1649
    %v1783 = vunpack.c.l.b16 %v1505
    %v1784 = vunpack.c.h.b16 %v1505
    %v1785 = vunpack.c.l.b16 %v1506
    %v1786 = vunpack.c.h.b16 %v1506
    %v1787 = vunpack.c.l.b16 %v1507
    %v1788 = vunpack.c.h.b16 %v1507
    %v1789 = vunpack.c.l.b16 %v1508
    %v1790 = vunpack.c.h.b16 %v1508
    %v1791 = vunpack.c.l.b16 %v1509
    %v1792 = vunpack.c.h.b16 %v1509
    %v1793 = vunpack.c.l.b16 %v1510
    %v1794 = vunpack.c.h.b16 %v1510
    %v1795 = vunpack.c.l.b16 %v1511
    %v1796 = vunpack.c.h.b16 %v1511
    %v1797 = vunpack.c.l.b16 %v1512
    %v1798 = vunpack.c.h.b16 %v1512
    %v1799 = vunpack.c.l.b16 %v1513
    %v1800 = vunpack.c.h.b16 %v1513
    %v1801 = vunpack.c.l.b16 %v1514
    %v1802 = vunpack.c.h.b16 %v1514
    %v1803 = vunpack.c.l.b16 %v1515
    %v1804 = vunpack.c.h.b16 %v1515
    %v1805 = vunpack.c.l.b16 %v1516
    %v1806 = vunpack.c.h.b16 %v1516
    %v1807 = vunpack.c.l.b16 %v1517
    %v1808 = vunpack.c.h.b16 %v1517
    %v1809 = vunpack.c.l.b16 %v1518
    %v1810 = vunpack.c.h.b16 %v1518
    %v1811 = vunpack.c.l.b16 %v1519
    %v1812 = vunpack.c.h.b16 %v1519
    %v1813 = vunpack.c.l.b16 %v1520
    %v1814 = vunpack.c.h.b16 %v1520
    %v1815 = vunpack.c.l.b16 %v1521
    %v1816 = vunpack.c.h.b16 %v1521
    %v1817 = vunpack.c.l.b16 %v1522
    %v1818 = vunpack.c.h.b16 %v1522
    %v1819 = vunpack.c.l.b16 %v1523
    %v1820 = vunpack.c.h.b16 %v1523
    %v1821 = vunpack.c.l.b16 %v1524
    %v1822 = vunpack.c.h.b16 %v1524
    %v1823 = vunpack.c.l.b16 %v1525
    %v1824 = vunpack.c.h.b16 %v1525
    %v1825 = vunpack.c.l.b16 %v1526
    %v1826 = vunpack.c.h.b16 %v1526
    %v1827 = vunpack.c.l.b16 %v1527
    %v1828 = vunpack.c.h.b16 %v1527
    %v1829 = vunpack.c.l.b16 %v1528
    %v1830 = vunpack.c.h.b16 %v1528
    %v1831 = vunpack.c.l.b16 %v1529
    %v1832 = vunpack.c.h.b16 %v1529
    %v1833 = vunpack.c.l.b16 %v1530
    %v1834 = vunpack.c.h.b16 %v1530
    %v1835 = vunpack.c.l.b16 %v1531
    %v1836 = vunpack.c.h.b16 %v1531
    %v1837 = vunpack.c.l.b16 %v1532
    %v1838 = vunpack.c.h.b16 %v1532
    %v1839 = vunpack.c.l.b16 %v1533
    %v1840 = vunpack.c.h.b16 %v1533
    %v1841 = vunpack.c.l.b16 %v1534
    %v1842 = vunpack.c.h.b16 %v1534
    %v1843 = vunpack.c.l.b16 %v1535
    %v1844 = vunpack.c.h.b16 %v1535
    %v1845 = vunpack.c.l.b16 %v1536
    %v1846 = vunpack.c.h.b16 %v1536
    %v1847 = vunpack.c.l.b16 %v1537
    %v1848 = vunpack.c.h.b16 %v1537
    %v1849 = vunpack.c.l.b16 %v1538
    %v1850 = vunpack.c.h.b16 %v1538
    %v1851 = vunpack.c.l.b16 %v1539
    %v1852 = vunpack.c.h.b16 %v1539
    %v1853 = vunpack.c.l.b16 %v1540
    %v1854 = vunpack.c.h.b16 %v1540
    %v1855 = vunpack.c.l.b16 %v1541
    %v1856 = vunpack.c.h.b16 %v1541
    %v1857 = vunpack.c.l.b16 %v1542
    %v1858 = vunpack.c.h.b16 %v1542
    %v1859 = vunpack.c.l.b16 %v1543
    %v1860 = vunpack.c.h.b16 %v1543
    %v1861 = vunpack.c.l.b16 %v1544
    %v1862 = vunpack.c.h.b16 %v1544
    %v1863 = vunpack.c.l.b16 %v1545
    %v1864 = vunpack.c.h.b16 %v1545
    %v1865 = vunpack.c.l.b16 %v1546
    %v1866 = vunpack.c.h.b16 %v1546
    %v1867 = vunpack.c.l.b16 %v1547
    %v1868 = vunpack.c.h.b16 %v1547
    %v1869 = vunpack.c.l.b16 %v1548
    %v1870 = vunpack.c.h.b16 %v1548
    %v1871 = vunpack.c.l.b16 %v1549
    %v1872 = vunpack.c.h.b16 %v1549
    %v1873 = vunpack.c.l.b16 %v1550
    %v1874 = vunpack.c.h.b16 %v1550
    %v1875 = vunpack.c.l.b16 %v1551
    %v1876 = vunpack.c.h.b16 %v1551
    %v1877 = vunpack.c.l.b16 %v1552
    %v1878 = vunpack.c.h.b16 %v1552
    %v1879 = vunpack.c.l.b16 %v1553
    %v1880 = vunpack.c.h.b16 %v1553
    %v1881 = vunpack.c.l.b16 %v1554
    %v1882 = vunpack.c.h.b16 %v1554
    %v1883 = vunpack.c.l.b16 %v1555
    %v1884 = vunpack.c.h.b16 %v1555
    %v1885 = vunpack.c.l.b16 %v1556
    %v1886 = vunpack.c.h.b16 %v1556
    %v1887 = vunpack.c.l.b16 %v1557
    %v1888 = vunpack.c.h.b16 %v1557
    %v1889 = vunpack.c.l.b16 %v1558
    %v1890 = vunpack.c.h.b16 %v1558
    %v1891 = vunpack.c.l.b16 %v1559
    %v1892 = vunpack.c.h.b16 %v1559
    %v1893 = vunpack.c.l.b16 %v1560
    %v1894 = vunpack.c.h.b16 %v1560
    %v1895 = vunpack.c.l.b16 %v1561
    %v1896 = vunpack.c.h.b16 %v1561
    %v1897 = vunpack.c.l.b16 %v1562
    %v1898 = vunpack.c.h.b16 %v1562
    %v1899 = vunpack.c.l.b16 %v1563
    %v1900 = vunpack.c.h.b16 %v1563
    %v1901 = vunpack.c.l.b16 %v1564
    %v1902 = vunpack.c.h.b16 %v1564
    %v1903 = vunpack.c.l.b16 %v1565
    %v1904 = vunpack.c.h.b16 %v1565
    %v1905 = vunpack.c.l.b16 %v1566
    %v1906 = vunpack.c.h.b16 %v1566
    %v1907 = vunpack.c.l.b16 %v1567
    %v1908 = vunpack.c.h.b16 %v1567
    %v1909 = vunpack.c.l.b16 %v1568
    %v1910 = vunpack.c.h.b16 %v1568
    %v1911 = vunpack.c.l.b16 %v1569
    %v1912 = vunpack.c.h.b16 %v1569
    %v1913 = vunpack.c.l.b16 %v1570
    %v1914 = vunpack.c.h.b16 %v1570
    %v1915 = vunpack.c.l.b16 %v1571
    %v1916 = vunpack.c.h.b16 %v1571
    %v1917 = vunpack.c.l.b16 %v1572
    %v1918 = vunpack.c.h.b16 %v1572
    %v1919 = vunpack.c.l.b16 %v1573
    %v1920 = vunpack.c.h.b16 %v1573
    %v1921 = vunpack.c.l.b16 %v1574
    %v1922 = vunpack.c.h.b16 %v1574
    %v1923 = vunpack.c.l.b16 %v1575
    %v1924 = vunpack.c.h.b16 %v1575
    %v1925 = vunpack.c.l.b16 %v1576
    %v1926 = vunpack.c.h.b16 %v1576
    %v1927 = vunpack.c.l.b16 %v1577
    %v1928 = vunpack.c.h.b16 %v1577
    %v1929 = vunpack.c.l.b16 %v1578
    %v1930 = vunpack.c.h.b16 %v1578
    %v1931 = vunpack.c.l.b16 %v1579
    %v1932 = vunpack.c.h.b16 %v1579
    %v1933 = vunpack.c.l.b16 %v1580
    %v1934 = vunpack.c.h.b16 %v1580
    %v1935 = vunpack.c.l.b16 %v1581
    %v1936 = vunpack.c.h.b16 %v1581
    %v1937 = vunpack.c.l.b16 %v1582
    %v1938 = vunpack.c.h.b16 %v1582
    %v1939 = vunpack.c.l.b16 %v1583
    %v1940 = vunpack.c.h.b16 %v1583
    %v1941 = vunpack.c.l.b16 %v1584
    %v1942 = vunpack.c.h.b16 %v1584
    %v1943 = vunpack.c.l.b16 %v1585
    %v1944 = vunpack.c.h.b16 %v1585
    %v1945 = vunpack.c.l.b16 %v1586
    %v1946 = vunpack.c.h.b16 %v1586
    %v1947 = vunpack.c.l.b16 %v1587
    %v1948 = vunpack.c.h.b16 %v1587
    %v1949 = vunpack.c.l.b16 %v1588
    %v1950 = vunpack.c.h.b16 %v1588
    %v1951 = vunpack.c.l.b16 %v1589
    %v1952 = vunpack.c.h.b16 %v1589
    %v1953 = vunpack.c.l.b16 %v1590
    %v1954 = vunpack.c.h.b16 %v1590
    %v1955 = vunpack.c.l.b16 %v1591
    %v1956 = vunpack.c.h.b16 %v1591
    %v1957 = vunpack.c.l.b16 %v1592
    %v1958 = vunpack.c.h.b16 %v1592
    %v1959 = vunpack.c.l.b16 %v1593
    %v1960 = vunpack.c.h.b16 %v1593
    %v1961 = vunpack.c.l.b16 %v1594
    %v1962 = vunpack.c.h.b16 %v1594
    %v1963 = vunpack.c.l.b16 %v1595
    %v1964 = vunpack.c.h.b16 %v1595
    %v1965 = vunpack.c.l.b16 %v1596
    %v1966 = vunpack.c.h.b16 %v1596
    %v1967 = vunpack.c.l.b16 %v1597
    %v1968 = vunpack.c.h.b16 %v1597
    %v1969 = vunpack.c.l.b16 %v1598
    %v1970 = vunpack.c.h.b16 %v1598
    %v1971 = vunpack.c.l.b16 %v1599
    %v1972 = vunpack.c.h.b16 %v1599
    %v1973 = vunpack.c.l.b16 %v1600
    %v1974 = vunpack.c.h.b16 %v1600
    %v1975 = vunpack.c.l.b16 %v1601
    %v1976 = vunpack.c.h.b16 %v1601
    %v1977 = vunpack.c.l.b16 %v1602
    %v1978 = vunpack.c.h.b16 %v1602
    %v1979 = vunpack.c.l.b16 %v1603
    %v1980 = vunpack.c.h.b16 %v1603
    %v1981 = vunpack.c.l.b16 %v1604
    %v1982 = vunpack.c.h.b16 %v1604
    %v1983 = vunpack.c.l.b16 %v1605
    %v1984 = vunpack.c.h.b16 %v1605
    %v1985 = vunpack.c.l.b16 %v1606
    %v1986 = vunpack.c.h.b16 %v1606
    %v1987 = vunpack.c.l.b16 %v1607
    %v1988 = vunpack.c.h.b16 %v1607
    %v1989 = vunpack.c.l.b16 %v1608
    %v1990 = vunpack.c.h.b16 %v1608
    %v1991 = vunpack.c.l.b16 %v1609
    %v1992 = vunpack.c.h.b16 %v1609
    %v1993 = vunpack.c.l.b16 %v1610
    %v1994 = vunpack.c.h.b16 %v1610
    %v1995 = vunpack.c.l.b16 %v1611
    %v1996 = vunpack.c.h.b16 %v1611
    %v1997 = vunpack.c.l.b16 %v1612
    %v1998 = vunpack.c.h.b16 %v1612
    %v1999 = vunpack.c.l.b16 %v1613
    %v2000 = vunpack.c.h.b16 %v1613
    %v2001 = vunpack.c.l.b16 %v1614
    %v2002 = vunpack.c.h.b16 %v1614
    %v2003 = vunpack.c.l.b16 %v1615
    %v2004 = vunpack.c.h.b16 %v1615
    %v2005 = vunpack.c.l.b16 %v1616
    %v2006 = vunpack.c.h.b16 %v1616
    %v2007 = vunpack.c.l.b16 %v1617
    %v2008 = vunpack.c.h.b16 %v1617
    %v2009 = vunpack.c.l.b16 %v1618
    %v2010 = vunpack.c.h.b16 %v1618
    %v2011 = vunpack.c.l.b16 %v1619
    %v2012 = vunpack.c.h.b16 %v1619
    %v2013 = vunpack.c.l.b16 %v1620
    %v2014 = vunpack.c.h.b16 %v1620
    %v2015 = vunpack.c.l.b16 %v1621
    %v2016 = vunpack.c.h.b16 %v1621
    %v2017 = vunpack.c.l.b16 %v1622
    %v2018 = vunpack.c.h.b16 %v1622
    %v2019 = vunpack.c.l.b16 %v1623
    %v2020 = vunpack.c.h.b16 %v1623
    %v2021 = vunpack.c.l.b16 %v1624
    %v2022 = vunpack.c.h.b16 %v1624
    %v2023 = vunpack.c.l.b16 %v1625
    %v2024 = vunpack.c.h.b16 %v1625
    %v2025 = vunpack.c.l.b16 %v1626
    %v2026 = vunpack.c.h.b16 %v1626
    %v2027 = vunpack.c.l.b16 %v1627
    %v2028 = vunpack.c.h.b16 %v1627
    %v2029 = vunpack.c.l.b16 %v1628
    %v2030 = vunpack.c.h.b16 %v1628
    %v2031 = vunpack.c.l.b16 %v1629
    %v2032 = vunpack.c.h.b16 %v1629
    %v2033 = vunpack.c.l.b16 %v1630
    %v2034 = vunpack.c.h.b16 %v1630
    %v2035 = vunpack.c.l.b16 %v1631
    %v2036 = vunpack.c.h.b16 %v1631
    %v2037 = vunpack.c.l.b16 %v1632
    %v2038 = vunpack.c.h.b16 %v1632
    %v2039 = vpack.c.b16 %v1787, %v1783
    %v2040 = vpack.c.b16 %v1788, %v1784
    %v2041 = vpack.c.b16 %v1789, %v1785
    %v2042 = vpack.c.b16 %v1790, %v1786
    %v2043 = vpack.c.b16 %v1795, %v1791
    %v2044 = vpack.c.b16 %v1796, %v1792
    %v2045 = vpack.c.b16 %v1797, %v1793
    %v2046 = vpack.c.b16 %v1798, %v1794
    %v2047 = vpack.c.b16 %v1803, %v1799
    %v2048 = vpack.c.b16 %v1804, %v1800
    %v2049 = vpack.c.b16 %v1805, %v1801
    %v2050 = vpack.c.b16 %v1806, %v1802
    %v2051 = vpack.c.b16 %v1811, %v1807
    %v2052 = vpack.c.b16 %v1812, %v1808
    %v2053 = vpack.c.b16 %v1813, %v1809
    %v2054 = vpack.c.b16 %v1814, %v1810
    %v2055 = vpack.c.b16 %v1819, %v1815
    %v2056 = vpack.c.b16 %v1820, %v1816
    %v2057 = vpack.c.b16 %v1821, %v1817
    %v2058 = vpack.c.b16 %v1822, %v1818
    %v2059 = vpack.c.b16 %v1827, %v1823
    %v2060 = vpack.c.b16 %v1828, %v1824
    %v2061 = vpack.c.b16 %v1829, %v1825
    %v2062 = vpack.c.b16 %v1830, %v1826
    %v2063 = vpack.c.b16 %v1835, %v1831
    %v2064 = vpack.c.b16 %v1836, %v1832
    %v2065 = vpack.c.b16 %v1837, %v1833
    %v2066 = vpack.c.b16 %v1838, %v1834
    %v2067 = vpack.c.b16 %v1843, %v1839
    %v2068 = vpack.c.b16 %v1844, %v1840
    %v2069 = vpack.c.b16 %v1845, %v1841
    %v2070 = vpack.c.b16 %v1846, %v1842
    %v2071 = vpack.c.b16 %v1851, %v1847
    %v2072 = vpack.c.b16 %v1852, %v1848
    %v2073 = vpack.c.b16 %v1853, %v1849
    %v2074 = vpack.c.b16 %v1854, %v1850
    %v2075 = vpack.c.b16 %v1859, %v1855
    %v2076 = vpack.c.b16 %v1860, %v1856
    %v2077 = vpack.c.b16 %v1861, %v1857
    %v2078 = vpack.c.b16 %v1862, %v1858
    %v2079 = vpack.c.b16 %v1867, %v1863
    %v2080 = vpack.c.b16 %v1868, %v1864
    %v2081 = vpack.c.b16 %v1869, %v1865
    %v2082 = vpack.c.b16 %v1870, %v1866
    %v2083 = vpack.c.b16 %v1875, %v1871
    %v2084 = vpack.c.b16 %v1876, %v1872
    %v2085 = vpack.c.b16 %v1877, %v1873
    %v2086 = vpack.c.b16 %v1878, %v1874
    %v2087 = vpack.c.b16 %v1883, %v1879
    %v2088 = vpack.c.b16 %v1884, %v1880
    %v2089 = vpack.c.b16 %v1885, %v1881
    %v2090 = vpack.c.b16 %v1886, %v1882
    %v2091 = vpack.c.b16 %v1891, %v1887
    %v2092 = vpack.c.b16 %v1892, %v1888
    %v2093 = vpack.c.b16 %v1893, %v1889
    %v2094 = vpack.c.b16 %v1894, %v1890
    %v2095 = vpack.c.b16 %v1899, %v1895
    %v2096 = vpack.c.b16 %v1900, %v1896
    %v2097 = vpack.c.b16 %v1901, %v1897
    %v2098 = vpack.c.b16 %v1902, %v1898
    %v2099 = vpack.c.b16 %v1907, %v1903
    %v2100 = vpack.c.b16 %v1908, %v1904
    %v2101 = vpack.c.b16 %v1909, %v1905
    %v2102 = vpack.c.b16 %v1910, %v1906
    %v2103 = vpack.c.b16 %v1915, %v1911
    %v2104 = vpack.c.b16 %v1916, %v1912
    %v2105 = vpack.c.b16 %v1917, %v1913
    %v2106 = vpack.c.b16 %v1918, %v1914
    %v2107 = vpack.c.b16 %v1923, %v1919
    %v2108 = vpack.c.b16 %v1924, %v1920
    %v2109 = vpack.c.b16 %v1925, %v1921
    %v2110 = vpack.c.b16 %v1926, %v1922
    %v2111 = vpack.c.b16 %v1931, %v1927
    %v2112 = vpack.c.b16 %v1932, %v1928
    %v2113 = vpack.c.b16 %v1933, %v1929
    %v2114 = vpack.c.b16 %v1934, %v1930
    %v2115 = vpack.c.b16 %v1939, %v1935
    %v2116 = vpack.c.b16 %v1940, %v1936
    %v2117 = vpack.c.b16 %v1941, %v1937
    %v2118 = vpack.c.b16 %v1942, %v1938
    %v2119 = vpack.c.b16 %v1947, %v1943
    %v2120 = vpack.c.b16 %v1948, %v1944
    %v2121 = vpack.c.b16 %v1949, %v1945
    %v2122 = vpack.c.b16 %v1950, %v1946
    %v2123 = vpack.c.b16 %v1955, %v1951
    %v2124 = vpack.c.b16 %v1956, %v1952
    %v2125 = vpack.c.b16 %v1957, %v1953
    %v2126 = vpack.c.b16 %v1958, %v1954
    %v2127 = vpack.c.b16 %v1963, %v1959
    %v2128 = vpack.c.b16 %v1964, %v1960
    %v2129 = vpack.c.b16 %v1965, %v1961
    %v2130 = vpack.c.b16 %v1966, %v1962
    %v2131 = vpack.c.b16 %v1971, %v1967
    %v2132 = vpack.c.b16 %v1972, %v1968
    %v2133 = vpack.c.b16 %v1973, %v1969
    %v2134 = vpack.c.b16 %v1974, %v1970
    %v2135 = vpack.c.b16 %v1979, %v1975
    %v2136 = vpack.c.b16 %v1980, %v1976
    %v2137 = vpack.c.b16 %v1981, %v1977
    %v2138 = vpack.c.b16 %v1982, %v1978
    %v2139 = vpack.c.b16 %v1987, %v1983
    %v2140 = vpack.c.b16 %v1988, %v1984
    %v2141 = vpack.c.b16 %v1989, %v1985
    %v2142 = vpack.c.b16 %v1990, %v1986
    %v2143 = vpack.c.b16 %v1995, %v1991
    %v2144 = vpack.c.b16 %v1996, %v1992
    %v2145 = vpack.c.b16 %v1997, %v1993
    %v2146 = vpack.c.b16 %v1998, %v1994
    %v2147 = vpack.c.b16 %v2003, %v1999
    %v2148 = vpack.c.b16 %v2004, %v2000
    %v2149 = vpack.c.b16 %v2005, %v2001
    %v2150 = vpack.c.b16 %v2006, %v2002
    %v2151 = vpack.c.b16 %v2011, %v2007
    %v2152 = vpack.c.b16 %v2012, %v2008
    %v2153 = vpack.c.b16 %v2013, %v2009
    %v2154 = vpack.c.b16 %v2014, %v2010
    %v2155 = vpack.c.b16 %v2019, %v2015
    %v2156 = vpack.c.b16 %v2020, %v2016
    %v2157 = vpack.c.b16 %v2021, %v2017
    %v2158 = vpack.c.b16 %v2022, %v2018
    %v2159 = vpack.c.b16 %v2027, %v2023
    %v2160 = vpack.c.b16 %v2028, %v2024
    %v2161 = vpack.c.b16 %v2029, %v2025
    %v2162 = vpack.c.b16 %v2030, %v2026
    %v2163 = vpack.c.b16 %v2035, %v2031
    %v2164 = vpack.c.b16 %v2036, %v2032
    %v2165 = vpack.c.b16 %v2037, %v2033
    %v2166 = vpack.c.b16 %v2038, %v2034
    %2295 = vmatprep.subr.bf16.mxu0 %v2040
    %2296 = vmatpush1.bf16.msra.mxu0 %v2039
    %2297 = vmatprep.subr.bf16.mxu0 %v2044
    %2298 = vmatpush1.bf16.msra.mxu0 %v2043
    %2299 = vmatprep.subr.bf16.mxu0 %v2048
    %2300 = vmatpush1.bf16.msra.mxu0 %v2047
    %2301 = vmatprep.subr.bf16.mxu0 %v2052
    %2302 = vmatpush1.bf16.msra.mxu0 %v2051
    %2303 = vmatprep.subr.bf16.mxu0 %v2056
    %2304 = vmatpush1.bf16.msra.mxu0 %v2055
    %2305 = vmatprep.subr.bf16.mxu0 %v2060
    %2306 = vmatpush1.bf16.msra.mxu0 %v2059
    %2307 = vmatprep.subr.bf16.mxu0 %v2064
    %2308 = vmatpush1.bf16.msra.mxu0 %v2063
    %2309 = vmatprep.subr.bf16.mxu0 %v2068
    %2310 = vmatpush1.bf16.msra.mxu0 %v2067
    %2311 = vmatprep.subr.bf16.mxu0 %v2072
    %2312 = vmatpush1.bf16.msra.mxu0 %v2071
    %2313 = vmatprep.subr.bf16.mxu0 %v2076
    %2314 = vmatpush1.bf16.msra.mxu0 %v2075
    %2315 = vmatprep.subr.bf16.mxu0 %v2080
    %2316 = vmatpush1.bf16.msra.mxu0 %v2079
    %2317 = vmatprep.subr.bf16.mxu0 %v2084
    %2318 = vmatpush1.bf16.msra.mxu0 %v2083
    %2319 = vmatprep.subr.bf16.mxu0 %v2088
    %2320 = vmatpush1.bf16.msra.mxu0 %v2087
    %2321 = vmatprep.subr.bf16.mxu0 %v2092
    %2322 = vmatpush1.bf16.msra.mxu0 %v2091
    %2323 = vmatprep.subr.bf16.mxu0 %v2096
    %2324 = vmatpush1.bf16.msra.mxu0 %v2095
    %2325 = vmatprep.subr.bf16.mxu0 %v2100
    %2326 = vmatpush1.bf16.msra.mxu0 %v2099
    %2327 = vmatprep.mubr.bf16.mxu0 %v1502
    %2328 = vmatmul.mubr.bf16.gmra.mrb[0].mxu0 %v1501
    %v2329 = vpop.f32.mrb[0].mxu0
    %v2330 = vadd.f32 %v1638, %v2329
    %v2331 = vpop.f32.mrb[0].mxu0
    %v2332 = vadd.f32 %v1642, %v2331
    %v2333 = vpop.f32.mrb[0].mxu0
    %v2334 = vpop.f32.mrb[0].mxu0
    %2335 = vdwg.mxu0
    %2336 = vmatprep.subr.bf16.mxu0 %v2104
    %2337 = vmatpush1.bf16.msra.mxu0 %v2103
    %2338 = vmatprep.subr.bf16.mxu0 %v2108
    %2339 = vmatpush1.bf16.msra.mxu0 %v2107
    %2340 = vmatprep.subr.bf16.mxu0 %v2112
    %2341 = vmatpush1.bf16.msra.mxu0 %v2111
    %2342 = vmatprep.subr.bf16.mxu0 %v2116
    %2343 = vmatpush1.bf16.msra.mxu0 %v2115
    %2344 = vmatprep.subr.bf16.mxu0 %v2120
    %2345 = vmatpush1.bf16.msra.mxu0 %v2119
    %2346 = vmatprep.subr.bf16.mxu0 %v2124
    %2347 = vmatpush1.bf16.msra.mxu0 %v2123
    %2348 = vmatprep.subr.bf16.mxu0 %v2128
    %2349 = vmatpush1.bf16.msra.mxu0 %v2127
    %2350 = vmatprep.subr.bf16.mxu0 %v2132
    %2351 = vmatpush1.bf16.msra.mxu0 %v2131
    %2352 = vmatprep.subr.bf16.mxu0 %v2136
    %2353 = vmatpush1.bf16.msra.mxu0 %v2135
    %2354 = vmatprep.subr.bf16.mxu0 %v2140
    %2355 = vmatpush1.bf16.msra.mxu0 %v2139
    %2356 = vmatprep.subr.bf16.mxu0 %v2144
    %2357 = vmatpush1.bf16.msra.mxu0 %v2143
    %2358 = vmatprep.subr.bf16.mxu0 %v2148
    %2359 = vmatpush1.bf16.msra.mxu0 %v2147
    %2360 = vmatprep.subr.bf16.mxu0 %v2152
    %2361 = vmatpush1.bf16.msra.mxu0 %v2151
    %2362 = vmatprep.subr.bf16.mxu0 %v2156
    %2363 = vmatpush1.bf16.msra.mxu0 %v2155
    %2364 = vmatprep.subr.bf16.mxu0 %v2160
    %2365 = vmatpush1.bf16.msra.mxu0 %v2159
    %2366 = vmatprep.subr.bf16.mxu0 %v2164
    %2367 = vmatpush1.bf16.msra.mxu0 %v2163
    %2368 = vmatprep.mubr.bf16.mxu0 %v1504
    %2369 = vmatmul.mubr.bf16.gmra.mrb[0].mxu0 %v1503
    %v2370 = vpop.f32.mrb[0].mxu0
    %v2371 = vadd.f32 %v2330, %v2370
    %v2372 = vpop.f32.mrb[0].mxu0
    %v2373 = vadd.f32 %v2332, %v2372
    %v2374 = vpop.f32.mrb[0].mxu0
    %v2375 = vpop.f32.mrb[0].mxu0
    %2376 = vdwg.mxu0
    %2377 = vmatprep.subr.bf16.mxu0 %v2042
    %2378 = vmatpush1.bf16.msra.mxu0 %v2041
    %2379 = vmatprep.subr.bf16.mxu0 %v2046
    %2380 = vmatpush1.bf16.msra.mxu0 %v2045
    %2381 = vmatprep.subr.bf16.mxu0 %v2050
    %2382 = vmatpush1.bf16.msra.mxu0 %v2049
    %2383 = vmatprep.subr.bf16.mxu0 %v2054
    %2384 = vmatpush1.bf16.msra.mxu0 %v2053
    %2385 = vmatprep.subr.bf16.mxu0 %v2058
    %2386 = vmatpush1.bf16.msra.mxu0 %v2057
    %2387 = vmatprep.subr.bf16.mxu0 %v2062
    %2388 = vmatpush1.bf16.msra.mxu0 %v2061
    %2389 = vmatprep.subr.bf16.mxu0 %v2066
    %2390 = vmatpush1.bf16.msra.mxu0 %v2065
    %2391 = vmatprep.subr.bf16.mxu0 %v2070
    %2392 = vmatpush1.bf16.msra.mxu0 %v2069
    %2393 = vmatprep.subr.bf16.mxu0 %v2074
    %2394 = vmatpush1.bf16.msra.mxu0 %v2073
    %2395 = vmatprep.subr.bf16.mxu0 %v2078
    %2396 = vmatpush1.bf16.msra.mxu0 %v2077
    %2397 = vmatprep.subr.bf16.mxu0 %v2082
    %2398 = vmatpush1.bf16.msra.mxu0 %v2081
    %2399 = vmatprep.subr.bf16.mxu0 %v2086
    %2400 = vmatpush1.bf16.msra.mxu0 %v2085
    %2401 = vmatprep.subr.bf16.mxu0 %v2090
    %2402 = vmatpush1.bf16.msra.mxu0 %v2089
    %2403 = vmatprep.subr.bf16.mxu0 %v2094
    %2404 = vmatpush1.bf16.msra.mxu0 %v2093
    %2405 = vmatprep.subr.bf16.mxu0 %v2098
    %2406 = vmatpush1.bf16.msra.mxu0 %v2097
    %2407 = vmatprep.subr.bf16.mxu0 %v2102
    %2408 = vmatpush1.bf16.msra.mxu0 %v2101
    %2409 = vmatprep.mubr.bf16.mxu0 %v1502
    %2410 = vmatmul.mubr.bf16.gmra.mrb[0].mxu0 %v1501
    %v2411 = vpop.f32.mrb[0].mxu0
    %v2412 = vadd.f32 %v1646, %v2411
    %v2413 = vpop.f32.mrb[0].mxu0
    %v2414 = vadd.f32 %v1650, %v2413
    %v2415 = vpop.f32.mrb[0].mxu0
    %v2416 = vpop.f32.mrb[0].mxu0
    %2417 = vdwg.mxu0
    %2418 = vmatprep.subr.bf16.mxu0 %v2106
    %2419 = vmatpush1.bf16.msra.mxu0 %v2105
    %2420 = vmatprep.subr.bf16.mxu0 %v2110
    %2421 = vmatpush1.bf16.msra.mxu0 %v2109
    %2422 = vmatprep.subr.bf16.mxu0 %v2114
    %2423 = vmatpush1.bf16.msra.mxu0 %v2113
    %2424 = vmatprep.subr.bf16.mxu0 %v2118
    %2425 = vmatpush1.bf16.msra.mxu0 %v2117
    %2426 = vmatprep.subr.bf16.mxu0 %v2122
    %2427 = vmatpush1.bf16.msra.mxu0 %v2121
    %2428 = vmatprep.subr.bf16.mxu0 %v2126
    %2429 = vmatpush1.bf16.msra.mxu0 %v2125
    %2430 = vmatprep.subr.bf16.mxu0 %v2130
    %2431 = vmatpush1.bf16.msra.mxu0 %v2129
    %2432 = vmatprep.subr.bf16.mxu0 %v2134
    %2433 = vmatpush1.bf16.msra.mxu0 %v2133
    %2434 = vmatprep.subr.bf16.mxu0 %v2138
    %2435 = vmatpush1.bf16.msra.mxu0 %v2137
    %2436 = vmatprep.subr.bf16.mxu0 %v2142
    %2437 = vmatpush1.bf16.msra.mxu0 %v2141
    %2438 = vmatprep.subr.bf16.mxu0 %v2146
    %2439 = vmatpush1.bf16.msra.mxu0 %v2145
    %2440 = vmatprep.subr.bf16.mxu0 %v2150
    %2441 = vmatpush1.bf16.msra.mxu0 %v2149
    %2442 = vmatprep.subr.bf16.mxu0 %v2154
    %2443 = vmatpush1.bf16.msra.mxu0 %v2153
    %2444 = vmatprep.subr.bf16.mxu0 %v2158
    %2445 = vmatpush1.bf16.msra.mxu0 %v2157
    %2446 = vmatprep.subr.bf16.mxu0 %v2162
    %2447 = vmatpush1.bf16.msra.mxu0 %v2161
    %2448 = vmatprep.subr.bf16.mxu0 %v2166
    %2449 = vmatpush1.bf16.msra.mxu0 %v2165
    %2450 = vmatprep.mubr.bf16.mxu0 %v1504
    %2451 = vmatmul.mubr.bf16.gmra.mrb[0].mxu0 %v1503
    %v2452 = vpop.f32.mrb[0].mxu0
    %v2453 = vadd.f32 %v2412, %v2452
    %v2454 = vpop.f32.mrb[0].mxu0
    %v2455 = vadd.f32 %v2414, %v2454
    %v2456 = vpop.f32.mrb[0].mxu0
    %v2457 = vpop.f32.mrb[0].mxu0
    %2458 = vdwg.mxu0
    %v2459 = vxor.u32 %v2371, 2147483648
    %v2460 = vxor.u32 %v2373, 2147483648
    %v2461 = vxor.u32 %v2453, 2147483648
    %v2462 = vxor.u32 %v2455, 2147483648
    %v2463 = vmul.f32 %v2459, 1.442695
    %v2464 = vpow.pop %v2463
    %v2465 = vmul.f32 %v2460, 1.442695
    %v2466 = vpow.pop %v2465
    %v2467 = vmul.f32 %v2461, 1.442695
    %v2468 = vpow.pop %v2467
    %v2469 = vmul.f32 %v2462, 1.442695
    %v2470 = vpow.pop %v2469
    %v2471 = vadd.f32 %v2464, 1.0
    %v2472 = vadd.f32 %v2466, 1.0
    %v2473 = vadd.f32 %v2468, 1.0
    %v2474 = vadd.f32 %v2470, 1.0
    %v2475 = vrcp.pop %v2471
    %v2476 = vmul.f32 1.0, %v2475
    %v2477 = vrcp.pop %v2472
    %v2478 = vmul.f32 1.0, %v2477
    %v2479 = vrcp.pop %v2473
    %v2480 = vmul.f32 1.0, %v2479
    %v2481 = vrcp.pop %v2474
    %v2482 = vmul.f32 1.0, %v2481
    %2483 = vst [vmem:[#allocation2] sm:$0xff] %v2476
    %2484 = vst [vmem:[#allocation2 + $0x8] sm:$0xff] %v2478
    %2485 = vst [vmem:[#allocation2 + $0x10] sm:$0xff] %v2480
    %2486 = vst [vmem:[#allocation2 + $0x18] sm:$0xff] %v2482
    // Predicated region
    $region30: #{decoder_forward.1} parent=1 // pred_check
      _
    $region31: #{decoder_forward.1} parent=1 // pred_check_branch
      %2488 = sbr.rel (0) target = $region33
    $region32: #{decoder_forward.1} parent=1 // pred_region
      %s2490 = ssub.s32 512, 512
      %2491 = vsyncadd [#allocation3], %s2490
      %s2493 = sshll.u32 [#allocation2], 4
      %s2494 = int_to_ptr.vmem [resolvable:$true] %s2493
      %2496 = dma.vmem_to_hbm [thread:$0]  %s2494, 512, %s7, [#allocation3]
    $region33: #{decoder_forward.1} parent=1 // pred_fallthru
      _
    // Predicated region
    $region34: #{decoder_forward.1} parent=1 // pred_check
      _
    $region35: #{decoder_forward.1} parent=1 // pred_check_branch
      %2498 = sbr.rel (0) target = $region37
    $region36: #{decoder_forward.1} parent=1 // pred_region
      %2499 = dma.done [#allocation3], 512
    $region37: #{decoder_forward.1} parent=1 // pred_fallthru
      _
    %2500 = vsyncpa [#allocation3], 1

</llo_original>
